<compile_context>
chip_gen: v5e
topology: v5e:2x2
jax: 0.10.0
libtpu: 0.0.40
codegen_flags: <defaults>
</compile_context>

<pallas_src>
import functools

import jax
import jax.numpy as jnp
import numpy as np
from jax import lax
from jax.experimental import pallas as pl
from jax.experimental.pallas import tpu as pltpu

SEQ = 90          # sequence length (hard-coded 90 in the PyTorch forward)
SEQ_PAD = 96      # padded to a multiple of 8 sublanes
C_X = 6           # raw feature channels of x
T_EMB = 8         # time-embedding dim
C_COND = 18       # condition_proj output dim
C_IN = C_X + T_EMB + C_COND   # 32 == conv1 in_channels
C_OUT_PAD = 128   # lane-dense output width (true out dim is 6)


def _conv_relu_fused(h, w_ref, b_ref, mask):
    """Conv1d(k=3, pad=1) + ReLU as one matmul + shifted column-block combine.

    h:      (M, Cin)      bf16, per-sequence pad rows are exactly zero
    w_ref:  (Cin, 3*Cout) bf16 fused taps [W_k0 | W_k1 | W_k2]
    b_ref:  (1, Cout)     f32
    mask:   (M, 1)        f32, 1.0 on valid rows, 0.0 on per-sequence pad rows
    """
    cout = w_ref.shape[1] // 3
    s = jnp.dot(h, w_ref[...], preferred_element_type=jnp.float32)   # (M, 3*Cout)
    s0 = s[:, 0:cout]            # tap k=0: x[l-1] -> out[l]
    s1 = s[:, cout:2 * cout]     # tap k=1: x[l]   -> out[l]
    s2 = s[:, 2 * cout:]         # tap k=2: x[l+1] -> out[l]
    m = s.shape[0]
    # left[l] = s0[l-1]; the wrapped / cross-sequence row is always a zero pad
    # row of h (so its matmul result is zero), matching conv zero padding.
    left = pltpu.roll(s0, 1, 0)
    # right[l] = s2[l+1]; the wrapped row lands in a pad row and is masked.
    right = pltpu.roll(s2, m - 1, 0)
    out = jnp.maximum(left + s1 + right + b_ref[...], 0.0) * mask
    return out.astype(jnp.bfloat16)


def _model_kernel(x_ref, w1_ref, b1_ref, w2_ref, b2_ref, w3_ref, b3_ref,
                  wfc_ref, bfc_ref, o_ref):
    M = x_ref.shape[0]
    # Per-sequence row mask: rows 90..95 of every 96-row sequence are padding.
    seq_iota = lax.broadcasted_iota(jnp.int32, (SEQ_PAD, 1), 0)
    mask_seq = (seq_iota < SEQ).astype(jnp.float32)                  # (96, 1)
    reps = M // SEQ_PAD
    mask = (jnp.concatenate([mask_seq] * reps, axis=0)
            if reps > 1 else mask_seq)                               # (M, 1)

    h = _conv_relu_fused(x_ref[...], w1_ref, b1_ref, mask)           # (M, 32)
    h = _conv_relu_fused(h, w2_ref, b2_ref, mask)                    # (M, 64)
    h = _conv_relu_fused(h, w3_ref, b3_ref, mask)                    # (M, 128)
    out = (jnp.dot(h, wfc_ref[...], preferred_element_type=jnp.float32)
           + bfc_ref[...])                                           # (M, 128)
    o_ref[...] = out.astype(o_ref.dtype)


def simple_conv1d_forward(x, t, y, params, bt=None):
    """x: (B, 90, 6) f32, t: (B,) f32, y: (B, 2, 6) f32 -> (B, 90, 6) f32."""
    B = x.shape[0]
    p = params

    # --- glue in plain JAX: condition projection + sinusoidal time embedding ---
    cond = jnp.dot(y.reshape(B, -1), p["w_cond"].T) + p["b_cond"]      # (B, 18)
    cond = jnp.broadcast_to(cond[:, None, :], (B, SEQ, C_COND))

    freqs = jnp.power(10000.0, jnp.arange(0, T_EMB, 2, dtype=jnp.float32) / T_EMB)
    sinus = t[:, None] / freqs                                          # (B, 4)
    tt = jnp.zeros((B, T_EMB), jnp.float32)
    tt = tt.at[:, 0::2].set(jnp.sin(sinus)).at[:, 1::2].set(jnp.cos(sinus))
    tt = jnp.broadcast_to(tt[:, None, :], (B, SEQ, T_EMB))

    x_cat = jnp.concatenate([x, tt, cond], axis=2)                      # (B, 90, 32)
    # TODO(synk): tt/cond are constant over L and could be folded into a per-batch
    # conv1 bias (with edge-row corrections) to shrink kernel input bytes further.

    # --- choose sequences-per-grid-step; keep >=2 grid steps for v7x megacore ---
    if bt is None:
        bt = max(1, min(8, B // 2))
    n_steps = -(-B // bt)
    B_pad = n_steps * bt

    # pad L 90->96 and B->B_pad with zeros (preserved by in-kernel masking),
    # cast to bf16, flatten to a lane/sublane-aligned (B_pad*96, 32) slab.
    xp = jnp.pad(x_cat.astype(jnp.bfloat16),
                 ((0, B_pad - B), (0, SEQ_PAD - SEQ), (0, 0)))
    x_flat = xp.reshape(B_pad * SEQ_PAD, C_IN)

    # conv weights (Cout, Cin, 3) -> fused (Cin, 3*Cout), bf16 for the MXU.
    def fuse(w):
        cout, cin, k = w.shape
        return jnp.transpose(w, (1, 2, 0)).reshape(cin, k * cout).astype(jnp.bfloat16)

    w1, w2, w3 = fuse(p["w1"]), fuse(p["w2"]), fuse(p["w3"])
    b1 = p["b1"][None, :].astype(jnp.float32)
    b2 = p["b2"][None, :].astype(jnp.float32)
    b3 = p["b3"][None, :].astype(jnp.float32)
    # lane-dense FC: pad 6 -> 128 output columns (zeros), slice back in wrapper.
    wfc = jnp.zeros((128, C_OUT_PAD), jnp.float32).at[:, :6].set(p["w_fc"].T)
    wfc = wfc.astype(jnp.bfloat16)
    bfc = jnp.zeros((1, C_OUT_PAD), jnp.float32).at[:, :6].set(p["b_fc"][None, :])

    M_blk = bt * SEQ_PAD
    full2d = lambda a: pl.BlockSpec(a.shape, lambda i: (0, 0))

    out_flat = pl.pallas_call(
        _model_kernel,
        out_shape=jax.ShapeDtypeStruct((B_pad * SEQ_PAD, C_OUT_PAD), jnp.float32),
        grid=(n_steps,),
        in_specs=[
            pl.BlockSpec((M_blk, C_IN), lambda i: (i, 0)),
            full2d(w1), full2d(b1),
            full2d(w2), full2d(b2),
            full2d(w3), full2d(b3),
            full2d(wfc), full2d(bfc),
        ],
        out_specs=pl.BlockSpec((M_blk, C_OUT_PAD), lambda i: (i, 0)),
        compiler_params=pltpu.CompilerParams(
            dimension_semantics=("parallel",)),
    )(x_flat, w1, b1, w2, b2, w3, b3, wfc, bfc)

    out = out_flat.reshape(B_pad, SEQ_PAD, C_OUT_PAD)
    return out[:B, :SEQ, :6]


def _init_params(key):
    ks = jax.random.split(key, 10)
    scale = 0.1
    return {
        "w1": scale * jax.random.normal(ks[0], (32, 32, 3), jnp.float32),
        "b1": scale * jax.random.normal(ks[1], (32,), jnp.float32),
        "w2": scale * jax.random.normal(ks[2], (64, 32, 3), jnp.float32),
        "b2": scale * jax.random.normal(ks[3], (64,), jnp.float32),
        "w3": scale * jax.random.normal(ks[4], (128, 64, 3), jnp.float32),
        "b3": scale * jax.random.normal(ks[5], (128,), jnp.float32),
        "w_fc": scale * jax.random.normal(ks[6], (6, 128), jnp.float32),
        "b_fc": scale * jax.random.normal(ks[7], (6,), jnp.float32),
        "w_cond": scale * jax.random.normal(ks[8], (18, 12), jnp.float32),
        "b_cond": scale * jax.random.normal(ks[9], (18,), jnp.float32),
    }


def _reference_forward(x, t, y, p):
    """Pure-JAX f32 reference (lax.conv) to validate the Pallas kernel."""
    B = x.shape[0]
    cond = jnp.dot(y.reshape(B, -1), p["w_cond"].T) + p["b_cond"]
    cond = jnp.broadcast_to(cond[:, None, :], (B, SEQ, C_COND))
    freqs = jnp.power(10000.0, jnp.arange(0, T_EMB, 2, dtype=jnp.float32) / T_EMB)
    sinus = t[:, None] / freqs
    tt = jnp.zeros((B, T_EMB), jnp.float32)
    tt = tt.at[:, 0::2].set(jnp.sin(sinus)).at[:, 1::2].set(jnp.cos(sinus))
    tt = jnp.broadcast_to(tt[:, None, :], (B, SEQ, T_EMB))
    h = jnp.concatenate([x, tt, cond], axis=2).transpose(0, 2, 1)   # (B, 32, 90)

    def conv(h, w, b):
        o = lax.conv_general_dilated(h, w, window_strides=(1,), padding=[(1, 1)],
                                     dimension_numbers=("NCH", "OIH", "NCH"))
        return jnp.maximum(o + b[None, :, None], 0.0)

    h = conv(h, p["w1"], p["b1"])
    h = conv(h, p["w2"], p["b2"])
    h = conv(h, p["w3"], p["b3"])
    h = h.transpose(0, 2, 1)                                        # (B, 90, 128)
    return jnp.dot(h, p["w_fc"].T) + p["b_fc"]


if __name__ == "__main__":
    key = jax.random.PRNGKey(0)
    k_p, k_x, k_t, k_y = jax.random.split(key, 4)

    params = _init_params(k_p)
    B = 2
    x = jax.random.normal(k_x, (B, SEQ, C_X), jnp.float32)   # (2, 90, 6)
    t = jax.random.uniform(k_t, (B,), jnp.float32) * 100.0
    y = jax.random.normal(k_y, (B, 2, 6), jnp.float32)

    fwd = jax.jit(functools.partial(simple_conv1d_forward, params=params))
    out = jax.block_until_ready(fwd(x, t, y))

    ref = _reference_forward(x, t, y, params)
    # bf16 inputs/weights with f32 accumulation -> slightly looser tolerance.
    np.testing.assert_allclose(np.asarray(out), np.asarray(ref),
                               atol=2e-2, rtol=2e-2)
    assert out.shape == (B, SEQ, 6) and out.dtype == jnp.float32
    print("KERNEL_OK")
</pallas_src>

<mosaic_0001>
module attributes {stable_mosaic.version = 11 : i64} {
  func.func @_model_kernel(%arg0: i32, %arg1: memref<96x32xbf16, #tpu.memory_space<vmem>>, %arg2: memref<32x96xbf16, #tpu.memory_space<vmem>>, %arg3: memref<1x32xf32, #tpu.memory_space<vmem>>, %arg4: memref<32x192xbf16, #tpu.memory_space<vmem>>, %arg5: memref<1x64xf32, #tpu.memory_space<vmem>>, %arg6: memref<64x384xbf16, #tpu.memory_space<vmem>>, %arg7: memref<1x128xf32, #tpu.memory_space<vmem>>, %arg8: memref<128x128xbf16, #tpu.memory_space<vmem>>, %arg9: memref<1x128xf32, #tpu.memory_space<vmem>>, %arg10: memref<96x128xf32, #tpu.memory_space<vmem>>) attributes {dimension_semantics = [#tpu.dimension_semantics<parallel>], iteration_bounds = array<i64: 2>, scalar_prefetch = 0 : i64, scratch_operands = 0 : i64, tpu.core_type = #tpu.core_type<tc>, window_params = [{transform_indices = @transform_0, window_bounds = array<i64: 96, 32>}, {pipeline_mode = #tpu.pipeline_mode<synchronous>, transform_indices = @transform_1, window_bounds = array<i64: 32, 96>}, {pipeline_mode = #tpu.pipeline_mode<synchronous>, transform_indices = @transform_2, window_bounds = array<i64: 1, 32>}, {pipeline_mode = #tpu.pipeline_mode<synchronous>, transform_indices = @transform_3, window_bounds = array<i64: 32, 192>}, {pipeline_mode = #tpu.pipeline_mode<synchronous>, transform_indices = @transform_4, window_bounds = array<i64: 1, 64>}, {pipeline_mode = #tpu.pipeline_mode<synchronous>, transform_indices = @transform_5, window_bounds = array<i64: 64, 384>}, {pipeline_mode = #tpu.pipeline_mode<synchronous>, transform_indices = @transform_6, window_bounds = array<i64: 1, 128>}, {pipeline_mode = #tpu.pipeline_mode<synchronous>, transform_indices = @transform_7, window_bounds = array<i64: 128, 128>}, {pipeline_mode = #tpu.pipeline_mode<synchronous>, transform_indices = @transform_8, window_bounds = array<i64: 1, 128>}, {transform_indices = @transform_9, window_bounds = array<i64: 96, 128>}]} {
    %0 = tpu.iota {dimensions = array<i32: 0>} : vector<96x1xi32>
    %c90_i32 = arith.constant 90 : i32
    %1 = vector.broadcast %c90_i32 : i32 to vector<96x1xi32>
    %2 = arith.cmpi slt, %0, %1 : vector<96x1xi32>
    %3 = arith.extui %2 : vector<96x1xi1> to vector<96x1xi32>
    %4 = arith.sitofp %3 : vector<96x1xi32> to vector<96x1xf32>
    %c0 = arith.constant 0 : index
    %c0_0 = arith.constant 0 : index
    %5 = vector.load %arg1[%c0, %c0_0] : memref<96x32xbf16, #tpu.memory_space<vmem>>, vector<96x32xbf16>
    %c0_1 = arith.constant 0 : index
    %c0_2 = arith.constant 0 : index
    %6 = vector.load %arg2[%c0_1, %c0_2] : memref<32x96xbf16, #tpu.memory_space<vmem>>, vector<32x96xbf16>
    %cst = arith.constant dense<0.000000e+00> : vector<96x96xf32>
    %7 = tpu.matmul %5, %6, %cst {dimension_numbers = #tpu.dot_dimension_numbers<[1], [0], [0], [1], [0, 0, 1, 1], [], []>} : vector<96x32xbf16>, vector<32x96xbf16>, vector<96x96xf32> -> vector<96x96xf32>
    %8 = vector.extract_strided_slice %7 {offsets = [0, 0], sizes = [96, 32], strides = [1, 1]} : vector<96x96xf32> to vector<96x32xf32>
    %9 = vector.extract_strided_slice %7 {offsets = [0, 32], sizes = [96, 32], strides = [1, 1]} : vector<96x96xf32> to vector<96x32xf32>
    %10 = vector.extract_strided_slice %7 {offsets = [0, 64], sizes = [96, 32], strides = [1, 1]} : vector<96x96xf32> to vector<96x32xf32>
    %c1_i32 = arith.constant 1 : i32
    %11 = tpu.dynamic_rotate %8 by %c1_i32 dim 0 : vector<96x32xf32>, i32 -> vector<96x32xf32>
    %c95_i32 = arith.constant 95 : i32
    %12 = tpu.dynamic_rotate %10 by %c95_i32 dim 0 : vector<96x32xf32>, i32 -> vector<96x32xf32>
    %13 = arith.addf %11, %9 : vector<96x32xf32>
    %14 = arith.addf %13, %12 : vector<96x32xf32>
    %c0_3 = arith.constant 0 : index
    %c0_4 = arith.constant 0 : index
    %15 = vector.load %arg3[%c0_3, %c0_4] : memref<1x32xf32, #tpu.memory_space<vmem>>, vector<1x32xf32>
    %16 = vector.broadcast %15 : vector<1x32xf32> to vector<96x32xf32>
    %17 = arith.addf %14, %16 : vector<96x32xf32>
    %cst_5 = arith.constant 0.000000e+00 : f32
    %18 = vector.broadcast %cst_5 : f32 to vector<96x32xf32>
    %19 = arith.maximumf %17, %18 : vector<96x32xf32>
    %20 = vector.broadcast %4 : vector<96x1xf32> to vector<96x32xf32>
    %21 = arith.mulf %19, %20 : vector<96x32xf32>
    %22 = arith.truncf %21 : vector<96x32xf32> to vector<96x32xbf16>
    %c0_6 = arith.constant 0 : index
    %c0_7 = arith.constant 0 : index
    %23 = vector.load %arg4[%c0_6, %c0_7] : memref<32x192xbf16, #tpu.memory_space<vmem>>, vector<32x192xbf16>
    %cst_8 = arith.constant dense<0.000000e+00> : vector<96x192xf32>
    %24 = tpu.matmul %22, %23, %cst_8 {dimension_numbers = #tpu.dot_dimension_numbers<[1], [0], [0], [1], [0, 0, 1, 1], [], []>} : vector<96x32xbf16>, vector<32x192xbf16>, vector<96x192xf32> -> vector<96x192xf32>
    %25 = vector.extract_strided_slice %24 {offsets = [0, 0], sizes = [96, 64], strides = [1, 1]} : vector<96x192xf32> to vector<96x64xf32>
    %26 = vector.extract_strided_slice %24 {offsets = [0, 64], sizes = [96, 64], strides = [1, 1]} : vector<96x192xf32> to vector<96x64xf32>
    %27 = vector.extract_strided_slice %24 {offsets = [0, 128], sizes = [96, 64], strides = [1, 1]} : vector<96x192xf32> to vector<96x64xf32>
    %c1_i32_9 = arith.constant 1 : i32
    %28 = tpu.dynamic_rotate %25 by %c1_i32_9 dim 0 : vector<96x64xf32>, i32 -> vector<96x64xf32>
    %c95_i32_10 = arith.constant 95 : i32
    %29 = tpu.dynamic_rotate %27 by %c95_i32_10 dim 0 : vector<96x64xf32>, i32 -> vector<96x64xf32>
    %30 = arith.addf %28, %26 : vector<96x64xf32>
    %31 = arith.addf %30, %29 : vector<96x64xf32>
    %c0_11 = arith.constant 0 : index
    %c0_12 = arith.constant 0 : index
    %32 = vector.load %arg5[%c0_11, %c0_12] : memref<1x64xf32, #tpu.memory_space<vmem>>, vector<1x64xf32>
    %33 = vector.broadcast %32 : vector<1x64xf32> to vector<96x64xf32>
    %34 = arith.addf %31, %33 : vector<96x64xf32>
    %cst_13 = arith.constant 0.000000e+00 : f32
    %35 = vector.broadcast %cst_13 : f32 to vector<96x64xf32>
    %36 = arith.maximumf %34, %35 : vector<96x64xf32>
    %37 = vector.broadcast %4 : vector<96x1xf32> to vector<96x64xf32>
    %38 = arith.mulf %36, %37 : vector<96x64xf32>
    %39 = arith.truncf %38 : vector<96x64xf32> to vector<96x64xbf16>
    %c0_14 = arith.constant 0 : index
    %c0_15 = arith.constant 0 : index
    %40 = vector.load %arg6[%c0_14, %c0_15] : memref<64x384xbf16, #tpu.memory_space<vmem>>, vector<64x384xbf16>
    %cst_16 = arith.constant dense<0.000000e+00> : vector<96x384xf32>
    %41 = tpu.matmul %39, %40, %cst_16 {dimension_numbers = #tpu.dot_dimension_numbers<[1], [0], [0], [1], [0, 0, 1, 1], [], []>} : vector<96x64xbf16>, vector<64x384xbf16>, vector<96x384xf32> -> vector<96x384xf32>
    %42 = vector.extract_strided_slice %41 {offsets = [0, 0], sizes = [96, 128], strides = [1, 1]} : vector<96x384xf32> to vector<96x128xf32>
    %43 = vector.extract_strided_slice %41 {offsets = [0, 128], sizes = [96, 128], strides = [1, 1]} : vector<96x384xf32> to vector<96x128xf32>
    %44 = vector.extract_strided_slice %41 {offsets = [0, 256], sizes = [96, 128], strides = [1, 1]} : vector<96x384xf32> to vector<96x128xf32>
    %c1_i32_17 = arith.constant 1 : i32
    %45 = tpu.dynamic_rotate %42 by %c1_i32_17 dim 0 : vector<96x128xf32>, i32 -> vector<96x128xf32>
    %c95_i32_18 = arith.constant 95 : i32
    %46 = tpu.dynamic_rotate %44 by %c95_i32_18 dim 0 : vector<96x128xf32>, i32 -> vector<96x128xf32>
    %47 = arith.addf %45, %43 : vector<96x128xf32>
    %48 = arith.addf %47, %46 : vector<96x128xf32>
    %c0_19 = arith.constant 0 : index
    %c0_20 = arith.constant 0 : index
    %49 = vector.load %arg7[%c0_19, %c0_20] : memref<1x128xf32, #tpu.memory_space<vmem>>, vector<1x128xf32>
    %50 = vector.broadcast %49 : vector<1x128xf32> to vector<96x128xf32>
    %51 = arith.addf %48, %50 : vector<96x128xf32>
    %cst_21 = arith.constant 0.000000e+00 : f32
    %52 = vector.broadcast %cst_21 : f32 to vector<96x128xf32>
    %53 = arith.maximumf %51, %52 : vector<96x128xf32>
    %54 = vector.broadcast %4 : vector<96x1xf32> to vector<96x128xf32>
    %55 = arith.mulf %53, %54 : vector<96x128xf32>
    %56 = arith.truncf %55 : vector<96x128xf32> to vector<96x128xbf16>
    %c0_22 = arith.constant 0 : index
    %c0_23 = arith.constant 0 : index
    %57 = vector.load %arg8[%c0_22, %c0_23] : memref<128x128xbf16, #tpu.memory_space<vmem>>, vector<128x128xbf16>
    %cst_24 = arith.constant dense<0.000000e+00> : vector<96x128xf32>
    %58 = tpu.matmul %56, %57, %cst_24 {dimension_numbers = #tpu.dot_dimension_numbers<[1], [0], [0], [1], [0, 0, 1, 1], [], []>} : vector<96x128xbf16>, vector<128x128xbf16>, vector<96x128xf32> -> vector<96x128xf32>
    %c0_25 = arith.constant 0 : index
    %c0_26 = arith.constant 0 : index
    %59 = vector.load %arg9[%c0_25, %c0_26] : memref<1x128xf32, #tpu.memory_space<vmem>>, vector<1x128xf32>
    %60 = vector.broadcast %59 : vector<1x128xf32> to vector<96x128xf32>
    %61 = arith.addf %58, %60 : vector<96x128xf32>
    %c0_27 = arith.constant 0 : index
    %c0_28 = arith.constant 0 : index
    %62 = vector.load %arg10[%c0_27, %c0_28] : memref<96x128xf32, #tpu.memory_space<vmem>>, vector<96x128xf32>
    tpu.vector_store %arg10[%c0_27, %c0_28], %61 {strides = array<i32>} : memref<96x128xf32, #tpu.memory_space<vmem>>, vector<96x128xf32>,
    return
  }
  func.func @transform_0(%arg0: i32) -> (i32, i32) {
    %c0_i32 = arith.constant 0 : i32
    %c0_i32_0 = arith.constant 0 : i32
    return %arg0, %c0_i32 : i32, i32
  }
  func.func @transform_1(%arg0: i32) -> (i32, i32) {
    %c0_i32 = arith.constant 0 : i32
    %c0_i32_0 = arith.constant 0 : i32
    %c0_i32_1 = arith.constant 0 : i32
    return %c0_i32, %c0_i32_0 : i32, i32
  }
  func.func @transform_2(%arg0: i32) -> (i32, i32) {
    %c0_i32 = arith.constant 0 : i32
    %c0_i32_0 = arith.constant 0 : i32
    %c0_i32_1 = arith.constant 0 : i32
    return %c0_i32, %c0_i32_0 : i32, i32
  }
  func.func @transform_3(%arg0: i32) -> (i32, i32) {
    %c0_i32 = arith.constant 0 : i32
    %c0_i32_0 = arith.constant 0 : i32
    %c0_i32_1 = arith.constant 0 : i32
    return %c0_i32, %c0_i32_0 : i32, i32
  }
  func.func @transform_4(%arg0: i32) -> (i32, i32) {
    %c0_i32 = arith.constant 0 : i32
    %c0_i32_0 = arith.constant 0 : i32
    %c0_i32_1 = arith.constant 0 : i32
    return %c0_i32, %c0_i32_0 : i32, i32
  }
  func.func @transform_5(%arg0: i32) -> (i32, i32) {
    %c0_i32 = arith.constant 0 : i32
    %c0_i32_0 = arith.constant 0 : i32
    %c0_i32_1 = arith.constant 0 : i32
    return %c0_i32, %c0_i32_0 : i32, i32
  }
  func.func @transform_6(%arg0: i32) -> (i32, i32) {
    %c0_i32 = arith.constant 0 : i32
    %c0_i32_0 = arith.constant 0 : i32
    %c0_i32_1 = arith.constant 0 : i32
    return %c0_i32, %c0_i32_0 : i32, i32
  }
  func.func @transform_7(%arg0: i32) -> (i32, i32) {
    %c0_i32 = arith.constant 0 : i32
    %c0_i32_0 = arith.constant 0 : i32
    %c0_i32_1 = arith.constant 0 : i32
    return %c0_i32, %c0_i32_0 : i32, i32
  }
  func.func @transform_8(%arg0: i32) -> (i32, i32) {
    %c0_i32 = arith.constant 0 : i32
    %c0_i32_0 = arith.constant 0 : i32
    %c0_i32_1 = arith.constant 0 : i32
    return %c0_i32, %c0_i32_0 : i32, i32
  }
  func.func @transform_9(%arg0: i32) -> (i32, i32) {
    %c0_i32 = arith.constant 0 : i32
    %c0_i32_0 = arith.constant 0 : i32
    return %arg0, %c0_i32 : i32, i32
  }
}

</mosaic_0001>

<llo_original>
// kernel: simple_conv1d_forward.1
$region0: #{simple_conv1d_forward.1}
  #allocation0 [shape = 'u32[]', space=smem, size = 0x4, offset = 0x4, fixed_abs, tag = 'smem constant byte address 0x4 - core index']
  #allocation1 [shape = 'u32[72,128]{1,0:T(1,128)}', space=vmem, size = 0x9000, scoped, tag = 'internal scratch']
  %s0 = inlined_call_operand.vmem [shape: bf16[192,32], index: 0, kind: input, shape index: {}]
  %s1 = inlined_call_operand.vmem [shape: bf16[32,96], index: 1, kind: input, shape index: {}]
  %s2 = inlined_call_operand.vmem [shape: f32[1,32], index: 2, kind: input, shape index: {}]
  %s3 = inlined_call_operand.vmem [shape: bf16[32,192], index: 3, kind: input, shape index: {}]
  %s4 = inlined_call_operand.vmem [shape: f32[1,64], index: 4, kind: input, shape index: {}]
  %s5 = inlined_call_operand.vmem [shape: bf16[64,384], index: 5, kind: input, shape index: {}]
  %s6 = inlined_call_operand.vmem [shape: f32[1,128], index: 6, kind: input, shape index: {}]
  %s7 = inlined_call_operand.vmem [shape: bf16[128,128], index: 7, kind: input, shape index: {}]
  %s8 = inlined_call_operand.vmem [shape: f32[1,128], index: 8, kind: input, shape index: {}]
  %s9 = inlined_call_operand.vmem [shape: f32[192,128], index: 9, kind: output, shape index: {}]
  %s10 = sld [smem:[#allocation0]]
  $region69: #{simple_conv1d_forward.1} parent=0
    _
  %s12 = ssub.s32 1, %s10
  %s13 = scalar_select 0, %s12, %s10
  loop: start=0, step=1, limit=4
  $region2: #{simple_conv1d_forward.1} parent=0 // loop_pre_header
    _
  $region3: #{simple_conv1d_forward.1} parent=0 // loop_header
    %s15 = sphi 0, %s19
    %p16 = scmp.ge.s32.totalorder %s15, 4
    %s25 = sphi 0, %s27
    %s28 = sphi 0, %s25
    %s29 = sphi 0, %s28
    %s45 = sphi 0, %s29
    %s49 = sphi 0, %s49
    %s51 = sphi 0, %s49
    %s52 = sphi 0, %s51
    %s66 = sphi 0, %s52
    %s70 = sphi 0, %s70
    %s72 = sphi 0, %s70
    %s73 = sphi 0, %s72
    %s87 = sphi 0, %s73
    %s91 = sphi 0, %s91
    %s93 = sphi 0, %s91
    %s94 = sphi 0, %s93
    %s108 = sphi 0, %s94
    %s112 = sphi 0, %s112
    %s114 = sphi 0, %s112
    %s115 = sphi 0, %s114
    %s129 = sphi 0, %s115
    %s133 = sphi 0, %s133
    %s135 = sphi 0, %s133
    %s136 = sphi 0, %s135
    %s150 = sphi 0, %s136
    %s154 = sphi 0, %s154
    %s156 = sphi 0, %s154
    %s157 = sphi 0, %s156
    %s171 = sphi 0, %s157
    %s175 = sphi 0, %s175
    %s177 = sphi 0, %s175
    %s178 = sphi 0, %s177
    %s192 = sphi 0, %s178
    %s196 = sphi 0, %s196
    %s198 = sphi 0, %s196
    %s199 = sphi 0, %s198
    %s213 = sphi 0, %s199
    %s219 = sphi 0, %s221
    %s222 = sphi 0, %s219
    %s223 = sphi 0, %s222
    %s239 = sphi 0, %s223
  $region4: #{simple_conv1d_forward.1} parent=0 // loop_header_branch
    %18 = sbr.rel (%p16) target = $region8
  $region5: #{simple_conv1d_forward.1} parent=0 // loop_body
    %s20 = ssub.s32 %s15, 1
    %s21 = ssub.s32 %s15, 2
    %s22 = sadd.s32 %s15, 1
    %s23 = ssub.s32 %s15, %s22
    %p24 = scmp.eq.s32.totalorder %s23, 0
    %s26 = sadd.s32 %s25, 1
    %s27 = scalar_select %p24, %s25, %s26
    %p30 = pneg %p24
    %p31 = scmp.eq.s32.totalorder %s15, 1
    %p32 = por %p30, %p31
    %p33 = scmp.ne.s32.totalorder %s25, %s28
    %p34 = scmp.eq.s32.totalorder %s15, 0
    %p35 = por %p33, %p34
    %p36 = scmp.ne.s32.totalorder %s25, %s28
    %p37 = scmp.eq.s32.totalorder %s20, 1
    %p38 = por %p36, %p37
    %p39 = scmp.ne.s32.totalorder %s28, %s29
    %p40 = scmp.eq.s32.totalorder %s20, 0
    %p41 = por %p39, %p40
    %p42 = scmp.ne.s32.totalorder %s28, %s29
    %p43 = scmp.eq.s32.totalorder %s21, 1
    %p44 = por %p42, %p43
    %p46 = scmp.ne.s32.totalorder %s29, %s45
    %p47 = scmp.eq.s32.totalorder %s21, 0
    %p48 = por %p46, %p47
    %s50 = sadd.s32 %s49, 1
    %p53 = scmp.eq.s32.totalorder %s15, 1
    %p54 = scmp.ne.s32.totalorder %s49, %s51
    %p55 = scmp.eq.s32.totalorder %s15, 0
    %p56 = por %p54, %p55
    %p57 = scmp.ne.s32.totalorder %s49, %s51
    %p58 = scmp.eq.s32.totalorder %s20, 1
    %p59 = por %p57, %p58
    %p60 = scmp.ne.s32.totalorder %s51, %s52
    %p61 = scmp.eq.s32.totalorder %s20, 0
    %p62 = por %p60, %p61
    %p63 = scmp.ne.s32.totalorder %s51, %s52
    %p64 = scmp.eq.s32.totalorder %s21, 1
    %p65 = por %p63, %p64
    %p67 = scmp.ne.s32.totalorder %s52, %s66
    %p68 = scmp.eq.s32.totalorder %s21, 0
    %p69 = por %p67, %p68
    %s71 = sadd.s32 %s70, 1
    %p74 = scmp.eq.s32.totalorder %s15, 1
    %p75 = scmp.ne.s32.totalorder %s70, %s72
    %p76 = scmp.eq.s32.totalorder %s15, 0
    %p77 = por %p75, %p76
    %p78 = scmp.ne.s32.totalorder %s70, %s72
    %p79 = scmp.eq.s32.totalorder %s20, 1
    %p80 = por %p78, %p79
    %p81 = scmp.ne.s32.totalorder %s72, %s73
    %p82 = scmp.eq.s32.totalorder %s20, 0
    %p83 = por %p81, %p82
    %p84 = scmp.ne.s32.totalorder %s72, %s73
    %p85 = scmp.eq.s32.totalorder %s21, 1
    %p86 = por %p84, %p85
    %p88 = scmp.ne.s32.totalorder %s73, %s87
    %p89 = scmp.eq.s32.totalorder %s21, 0
    %p90 = por %p88, %p89
    %s92 = sadd.s32 %s91, 1
    %p95 = scmp.eq.s32.totalorder %s15, 1
    %p96 = scmp.ne.s32.totalorder %s91, %s93
    %p97 = scmp.eq.s32.totalorder %s15, 0
    %p98 = por %p96, %p97
    %p99 = scmp.ne.s32.totalorder %s91, %s93
    %p100 = scmp.eq.s32.totalorder %s20, 1
    %p101 = por %p99, %p100
    %p102 = scmp.ne.s32.totalorder %s93, %s94
    %p103 = scmp.eq.s32.totalorder %s20, 0
    %p104 = por %p102, %p103
    %p105 = scmp.ne.s32.totalorder %s93, %s94
    %p106 = scmp.eq.s32.totalorder %s21, 1
    %p107 = por %p105, %p106
    %p109 = scmp.ne.s32.totalorder %s94, %s108
    %p110 = scmp.eq.s32.totalorder %s21, 0
    %p111 = por %p109, %p110
    %s113 = sadd.s32 %s112, 1
    %p116 = scmp.eq.s32.totalorder %s15, 1
    %p117 = scmp.ne.s32.totalorder %s112, %s114
    %p118 = scmp.eq.s32.totalorder %s15, 0
    %p119 = por %p117, %p118
    %p120 = scmp.ne.s32.totalorder %s112, %s114
    %p121 = scmp.eq.s32.totalorder %s20, 1
    %p122 = por %p120, %p121
    %p123 = scmp.ne.s32.totalorder %s114, %s115
    %p124 = scmp.eq.s32.totalorder %s20, 0
    %p125 = por %p123, %p124
    %p126 = scmp.ne.s32.totalorder %s114, %s115
    %p127 = scmp.eq.s32.totalorder %s21, 1
    %p128 = por %p126, %p127
    %p130 = scmp.ne.s32.totalorder %s115, %s129
    %p131 = scmp.eq.s32.totalorder %s21, 0
    %p132 = por %p130, %p131
    %s134 = sadd.s32 %s133, 1
    %p137 = scmp.eq.s32.totalorder %s15, 1
    %p138 = scmp.ne.s32.totalorder %s133, %s135
    %p139 = scmp.eq.s32.totalorder %s15, 0
    %p140 = por %p138, %p139
    %p141 = scmp.ne.s32.totalorder %s133, %s135
    %p142 = scmp.eq.s32.totalorder %s20, 1
    %p143 = por %p141, %p142
    %p144 = scmp.ne.s32.totalorder %s135, %s136
    %p145 = scmp.eq.s32.totalorder %s20, 0
    %p146 = por %p144, %p145
    %p147 = scmp.ne.s32.totalorder %s135, %s136
    %p148 = scmp.eq.s32.totalorder %s21, 1
    %p149 = por %p147, %p148
    %p151 = scmp.ne.s32.totalorder %s136, %s150
    %p152 = scmp.eq.s32.totalorder %s21, 0
    %p153 = por %p151, %p152
    %s155 = sadd.s32 %s154, 1
    %p158 = scmp.eq.s32.totalorder %s15, 1
    %p159 = scmp.ne.s32.totalorder %s154, %s156
    %p160 = scmp.eq.s32.totalorder %s15, 0
    %p161 = por %p159, %p160
    %p162 = scmp.ne.s32.totalorder %s154, %s156
    %p163 = scmp.eq.s32.totalorder %s20, 1
    %p164 = por %p162, %p163
    %p165 = scmp.ne.s32.totalorder %s156, %s157
    %p166 = scmp.eq.s32.totalorder %s20, 0
    %p167 = por %p165, %p166
    %p168 = scmp.ne.s32.totalorder %s156, %s157
    %p169 = scmp.eq.s32.totalorder %s21, 1
    %p170 = por %p168, %p169
    %p172 = scmp.ne.s32.totalorder %s157, %s171
    %p173 = scmp.eq.s32.totalorder %s21, 0
    %p174 = por %p172, %p173
    %s176 = sadd.s32 %s175, 1
    %p179 = scmp.eq.s32.totalorder %s15, 1
    %p180 = scmp.ne.s32.totalorder %s175, %s177
    %p181 = scmp.eq.s32.totalorder %s15, 0
    %p182 = por %p180, %p181
    %p183 = scmp.ne.s32.totalorder %s175, %s177
    %p184 = scmp.eq.s32.totalorder %s20, 1
    %p185 = por %p183, %p184
    %p186 = scmp.ne.s32.totalorder %s177, %s178
    %p187 = scmp.eq.s32.totalorder %s20, 0
    %p188 = por %p186, %p187
    %p189 = scmp.ne.s32.totalorder %s177, %s178
    %p190 = scmp.eq.s32.totalorder %s21, 1
    %p191 = por %p189, %p190
    %p193 = scmp.ne.s32.totalorder %s178, %s192
    %p194 = scmp.eq.s32.totalorder %s21, 0
    %p195 = por %p193, %p194
    %s197 = sadd.s32 %s196, 1
    %p200 = scmp.eq.s32.totalorder %s15, 1
    %p201 = scmp.ne.s32.totalorder %s196, %s198
    %p202 = scmp.eq.s32.totalorder %s15, 0
    %p203 = por %p201, %p202
    %p204 = scmp.ne.s32.totalorder %s196, %s198
    %p205 = scmp.eq.s32.totalorder %s20, 1
    %p206 = por %p204, %p205
    %p207 = scmp.ne.s32.totalorder %s198, %s199
    %p208 = scmp.eq.s32.totalorder %s20, 0
    %p209 = por %p207, %p208
    %p210 = scmp.ne.s32.totalorder %s198, %s199
    %p211 = scmp.eq.s32.totalorder %s21, 1
    %p212 = por %p210, %p211
    %p214 = scmp.ne.s32.totalorder %s199, %s213
    %p215 = scmp.eq.s32.totalorder %s21, 0
    %p216 = por %p214, %p215
    %s217 = ssub.s32 %s15, %s22
    %p218 = scmp.eq.s32.totalorder %s217, 0
    %s220 = sadd.s32 %s219, 1
    %s221 = scalar_select %p218, %s219, %s220
    %p224 = pneg %p218
    %p225 = scmp.eq.s32.totalorder %s15, 1
    %p226 = por %p224, %p225
    %p227 = scmp.ne.s32.totalorder %s219, %s222
    %p228 = scmp.eq.s32.totalorder %s15, 0
    %p229 = por %p227, %p228
    %p230 = scmp.ne.s32.totalorder %s219, %s222
    %p231 = scmp.eq.s32.totalorder %s20, 1
    %p232 = por %p230, %p231
    %p233 = scmp.ne.s32.totalorder %s222, %s223
    %p234 = scmp.eq.s32.totalorder %s20, 0
    %p235 = por %p233, %p234
    %p236 = scmp.ne.s32.totalorder %s222, %s223
    %p237 = scmp.eq.s32.totalorder %s21, 1
    %p238 = por %p236, %p237
    %p240 = scmp.ne.s32.totalorder %s223, %s239
    %p241 = scmp.eq.s32.totalorder %s21, 0
    %p242 = por %p240, %p241
    %p243 = scmp.le.s32.totalorder 1, %s15
    %p244 = scmp.lt.s32.totalorder %s15, 3
    %p245 = pnand %p243, %p244
    %p246 = pneg %p245
    // Predicated region
    $region9: #{simple_conv1d_forward.1} parent=5 // pred_check
      _
    $region10: #{simple_conv1d_forward.1} parent=5 // pred_check_branch
      %248 = sbr.rel (%p245) target = $region12
    $region11: #{simple_conv1d_forward.1} parent=5 // pred_region
      %s249 = ssub.s32 %s15, 1
      // Predicated region
      $region13: #{simple_conv1d_forward.1} parent=11 // pred_check
        %p250 = pneg %p62
      $region14: #{simple_conv1d_forward.1} parent=11 // pred_check_branch
        %252 = sbr.rel (%p250) target = $region16
      $region15: #{simple_conv1d_forward.1} parent=11 // pred_region
        _
      $region16: #{simple_conv1d_forward.1} parent=11 // pred_fallthru
        _
      // Predicated region
      $region17: #{simple_conv1d_forward.1} parent=11 // pred_check
        %p253 = pneg %p83
      $region18: #{simple_conv1d_forward.1} parent=11 // pred_check_branch
        %255 = sbr.rel (%p253) target = $region20
      $region19: #{simple_conv1d_forward.1} parent=11 // pred_region
        _
      $region20: #{simple_conv1d_forward.1} parent=11 // pred_fallthru
        _
      // Predicated region
      $region21: #{simple_conv1d_forward.1} parent=11 // pred_check
        %p256 = pneg %p104
      $region22: #{simple_conv1d_forward.1} parent=11 // pred_check_branch
        %258 = sbr.rel (%p256) target = $region24
      $region23: #{simple_conv1d_forward.1} parent=11 // pred_region
        _
      $region24: #{simple_conv1d_forward.1} parent=11 // pred_fallthru
        _
      // Predicated region
      $region25: #{simple_conv1d_forward.1} parent=11 // pred_check
        %p259 = pneg %p125
      $region26: #{simple_conv1d_forward.1} parent=11 // pred_check_branch
        %261 = sbr.rel (%p259) target = $region28
      $region27: #{simple_conv1d_forward.1} parent=11 // pred_region
        _
      $region28: #{simple_conv1d_forward.1} parent=11 // pred_fallthru
        _
      // Predicated region
      $region29: #{simple_conv1d_forward.1} parent=11 // pred_check
        %p262 = pneg %p146
      $region30: #{simple_conv1d_forward.1} parent=11 // pred_check_branch
        %264 = sbr.rel (%p262) target = $region32
      $region31: #{simple_conv1d_forward.1} parent=11 // pred_region
        _
      $region32: #{simple_conv1d_forward.1} parent=11 // pred_fallthru
        _
      // Predicated region
      $region33: #{simple_conv1d_forward.1} parent=11 // pred_check
        %p265 = pneg %p167
      $region34: #{simple_conv1d_forward.1} parent=11 // pred_check_branch
        %267 = sbr.rel (%p265) target = $region36
      $region35: #{simple_conv1d_forward.1} parent=11 // pred_region
        _
      $region36: #{simple_conv1d_forward.1} parent=11 // pred_fallthru
        _
      // Predicated region
      $region37: #{simple_conv1d_forward.1} parent=11 // pred_check
        %p268 = pneg %p188
      $region38: #{simple_conv1d_forward.1} parent=11 // pred_check_branch
        %270 = sbr.rel (%p268) target = $region40
      $region39: #{simple_conv1d_forward.1} parent=11 // pred_region
        _
      $region40: #{simple_conv1d_forward.1} parent=11 // pred_fallthru
        _
      // Predicated region
      $region41: #{simple_conv1d_forward.1} parent=11 // pred_check
        %p271 = pneg %p209
      $region42: #{simple_conv1d_forward.1} parent=11 // pred_check_branch
        %273 = sbr.rel (%p271) target = $region44
      $region43: #{simple_conv1d_forward.1} parent=11 // pred_region
        _
      $region44: #{simple_conv1d_forward.1} parent=11 // pred_fallthru
        _
    $region12: #{simple_conv1d_forward.1} parent=5 // pred_fallthru
      _
    %p274 = scmp.lt.s32.totalorder %s15, 2
    // Predicated region
    $region45: #{simple_conv1d_forward.1} parent=5 // pred_check
      %p275 = pneg %p274
    $region46: #{simple_conv1d_forward.1} parent=5 // pred_check_branch
      %277 = sbr.rel (%p275) target = $region48
    $region47: #{simple_conv1d_forward.1} parent=5 // pred_region
      // Predicated region
      $region49: #{simple_conv1d_forward.1} parent=47 // pred_check
        %p278 = pneg %p35
      $region50: #{simple_conv1d_forward.1} parent=47 // pred_check_branch
        %280 = sbr.rel (%p278) target = $region52
      $region51: #{simple_conv1d_forward.1} parent=47 // pred_region
        %s281 = smul.u32 12, %s15
        %p282 = scmp.lt.s32.totalorder %s281, 23
        %s283 = scalar_select %p282, %s281, 23
        %s284 = smul.addr %s283, 4
        %s285 = scalar_lea.vmem %s0, %s284
        %s286 = smul.u32 12, %s15
      $region52: #{simple_conv1d_forward.1} parent=47 // pred_fallthru
        _
    $region48: #{simple_conv1d_forward.1} parent=5 // pred_fallthru
      _
    %p287 = scmp.le.s32.totalorder 1, %s15
    %p288 = scmp.lt.s32.totalorder %s15, 3
    %p289 = pnand %p287, %p288
    %p290 = pneg %p289
    // Predicated region
    $region53: #{simple_conv1d_forward.1} parent=5 // pred_check
      _
    $region54: #{simple_conv1d_forward.1} parent=5 // pred_check_branch
      %292 = sbr.rel (%p289) target = $region56
    $region55: #{simple_conv1d_forward.1} parent=5 // pred_region
      %s293 = ssub.s32 %s15, 1
      %s294 = smul.u32 12, %s20
      %p295 = scmp.lt.s32.totalorder %s294, 23
      %s296 = scalar_select %p295, %s294, 23
      %s297 = smul.addr %s296, 4
      %s298 = scalar_lea.vmem %s0, %s297
      %p299 = pneg %p41
      %p300 = pneg %p38
      %p301 = pneg %p62
      %p302 = pneg %p59
      %p303 = pneg %p83
      %p304 = pneg %p80
      %p305 = pneg %p104
      %p306 = pneg %p101
      %p307 = pneg %p125
      %p308 = pneg %p122
      %p309 = pneg %p146
      %p310 = pneg %p143
      %p311 = pneg %p167
      %p312 = pneg %p164
      %p313 = pneg %p188
      %p314 = pneg %p185
      %p315 = pneg %p209
      %p316 = pneg %p206
      %p317 = pneg %p235
      %p318 = pneg %p232
      %s319 = smul.u32 12, %s20
      %p320 = scmp.lt.s32.totalorder %s319, 23
      %s321 = scalar_select %p320, %s319, 23
      %s322 = smul.addr %s321, 8
      %s323 = scalar_lea.vmem %s9, %s322
      %s324 = smul.u32 12, %s20
      %p325 = scmp.lt.s32.totalorder %s324, 23
      %s326 = scalar_select %p325, %s324, 23
      %s327 = smul.addr %s326, 4
      %s328 = scalar_lea.vmem %s0, %s327
      %s329 = smul.u32 12, %s20
      %s330 = smul.u32 12, %s20
      %p331 = scmp.lt.s32.totalorder %s330, 23
      %s332 = scalar_select %p331, %s330, 23
      %s333 = smul.addr %s332, 8
      %s334 = scalar_lea.vmem %s9, %s333
      %s335 = smul.u32 12, %s20
      %v337 = vlaneseq
      %v338 = vshrl.u32 %v337, 7
      %v339 = vadd.s32 %v338, 8
      %v340 = vadd.s32 %v338, 16
      %v341 = vadd.s32 %v338, 24
      %v342 = vadd.s32 %v338, 32
      %v343 = vadd.s32 %v338, 40
      %v344 = vadd.s32 %v338, 48
      %v345 = vadd.s32 %v338, 56
      %v346 = vadd.s32 %v338, 64
      %v347 = vadd.s32 %v338, 72
      %v348 = vadd.s32 %v338, 80
      %v349 = vadd.s32 %v338, 88
      %vm350 = vcmp.lt.s32.totalorder %v338, 90
      %vm351 = vcmp.lt.s32.totalorder %v339, 90
      %vm352 = vcmp.lt.s32.totalorder %v340, 90
      %vm353 = vcmp.lt.s32.totalorder %v341, 90
      %vm354 = vcmp.lt.s32.totalorder %v342, 90
      %vm355 = vcmp.lt.s32.totalorder %v343, 90
      %vm356 = vcmp.lt.s32.totalorder %v344, 90
      %vm357 = vcmp.lt.s32.totalorder %v345, 90
      %vm358 = vcmp.lt.s32.totalorder %v346, 90
      %vm359 = vcmp.lt.s32.totalorder %v347, 90
      %vm360 = vcmp.lt.s32.totalorder %v348, 90
      %vm361 = vcmp.lt.s32.totalorder %v349, 90
      %v362 = vsel %vm350, 1, 0
      %v363 = vsel %vm351, 1, 0
      %v364 = vsel %vm352, 1, 0
      %v365 = vsel %vm353, 1, 0
      %v366 = vsel %vm354, 1, 0
      %v367 = vsel %vm355, 1, 0
      %v368 = vsel %vm356, 1, 0
      %v369 = vsel %vm357, 1, 0
      %v370 = vsel %vm358, 1, 0
      %v371 = vsel %vm359, 1, 0
      %v372 = vsel %vm360, 1, 0
      %v373 = vsel %vm361, 1, 0
      %v374 = vcvt.s32.f32 %v362
      %v375 = vcvt.s32.f32 %v363
      %v376 = vcvt.s32.f32 %v364
      %v377 = vcvt.s32.f32 %v365
      %v378 = vcvt.s32.f32 %v366
      %v379 = vcvt.s32.f32 %v367
      %v380 = vcvt.s32.f32 %v368
      %v381 = vcvt.s32.f32 %v369
      %v382 = vcvt.s32.f32 %v370
      %v383 = vcvt.s32.f32 %v371
      %v384 = vcvt.s32.f32 %v372
      %v385 = vcvt.s32.f32 %v373
      %v386 = vld [vmem:[%s328] sm:$0xf]
      %v387 = vld [vmem:[%s328 + $0x4] sm:$0xf]
      %v388 = vld [vmem:[%s328 + $0x8] sm:$0xf]
      %v389 = vld [vmem:[%s328 + $0xc] sm:$0xf]
      %v390 = vld [vmem:[%s328 + $0x10] sm:$0xf]
      %v391 = vld [vmem:[%s328 + $0x14] sm:$0xf]
      %v392 = vld [vmem:[%s328 + $0x18] sm:$0xf]
      %v393 = vld [vmem:[%s328 + $0x1c] sm:$0xf]
      %v394 = vld [vmem:[%s328 + $0x20] sm:$0xf]
      %v395 = vld [vmem:[%s328 + $0x24] sm:$0xf]
      %v396 = vld [vmem:[%s328 + $0x28] sm:$0xf]
      %v397 = vld [vmem:[%s328 + $0x2c] sm:$0xf]
      %v398 = vld [vmem:[%s1] sm:$0xf]
      %v399 = vld [vmem:[%s1 + $0x4] sm:$0xf]
      %v400 = vld [vmem:[%s1 + $0x8] sm:$0xf]
      %v401 = vld [vmem:[%s1 + $0xc] sm:$0xf]
      %v414 = vunpack.c.l.b16 %v386
      %v415 = vunpack.c.l.b16 %v387
      %v416 = vunpack.c.l.b16 %v388
      %v417 = vunpack.c.l.b16 %v389
      %v418 = vunpack.c.l.b16 %v390
      %v419 = vunpack.c.l.b16 %v391
      %v420 = vunpack.c.l.b16 %v392
      %v421 = vunpack.c.l.b16 %v393
      %v422 = vunpack.c.l.b16 %v394
      %v423 = vunpack.c.l.b16 %v395
      %v424 = vunpack.c.l.b16 %v396
      %v425 = vunpack.c.l.b16 %v397
      %v426 = vpack.c.b16 %v415, %v414
      %v427 = vpack.c.b16 %v417, %v416
      %v428 = vpack.c.b16 %v419, %v418
      %v429 = vpack.c.b16 %v421, %v420
      %v430 = vpack.c.b16 %v423, %v422
      %v431 = vpack.c.b16 %v425, %v424
      %v436 = vunpack.c.l.b16 %v398
      %v437 = vunpack.c.l.b16 %v399
      %v438 = vunpack.c.l.b16 %v400
      %v439 = vunpack.c.l.b16 %v401
      %v440 = vpack.c.b16 %v437, %v436
      %v441 = vpack.c.b16 %v439, %v438
      %vm444 = vcmask 261120
      %v446 = vsel %vm444, %v426, 0
      %v449 = vsel %vm444, %v427, 0
      %v452 = vsel %vm444, %v428, 0
      %v455 = vsel %vm444, %v429, 0
      %v458 = vsel %vm444, %v430, 0
      %v461 = vsel %vm444, %v431, 0
      %463 = vmatpush.bf16.msra.mxu0 0
      %464 = vmatpush.bf16.msra.mxu0 0
      %465 = vmatpush.bf16.msra.mxu0 0
      %466 = vmatpush.bf16.msra.mxu0 0
      %467 = vmatpush.bf16.msra.mxu0 0
      %468 = vmatpush.bf16.msra.mxu0 0
      %469 = vmatpush.bf16.msra.mxu0 %v441
      %470 = vmatpush.bf16.msra.mxu0 %v440
      %471 = vmatmul.bf16.gmra.mxu0 %v446
      %v472 = vpop.f32.mrf.mxu0
      %v473 = vadd.f32 0.0, %v472
      %v474 = vpop.f32.mrf.mxu0
      %v475 = vadd.f32 0.0, %v474
      %476 = vmatmul.bf16.gmra.mxu0 %v449
      %v477 = vpop.f32.mrf.mxu0
      %v478 = vadd.f32 0.0, %v477
      %v479 = vpop.f32.mrf.mxu0
      %v480 = vadd.f32 0.0, %v479
      %481 = vmatmul.bf16.gmra.mxu0 %v452
      %v482 = vpop.f32.mrf.mxu0
      %v483 = vadd.f32 0.0, %v482
      %v484 = vpop.f32.mrf.mxu0
      %v485 = vadd.f32 0.0, %v484
      %486 = vmatmul.bf16.gmra.mxu0 %v455
      %v487 = vpop.f32.mrf.mxu0
      %v488 = vadd.f32 0.0, %v487
      %v489 = vpop.f32.mrf.mxu0
      %v490 = vadd.f32 0.0, %v489
      %491 = vmatmul.bf16.gmra.mxu0 %v458
      %v492 = vpop.f32.mrf.mxu0
      %v493 = vadd.f32 0.0, %v492
      %v494 = vpop.f32.mrf.mxu0
      %v495 = vadd.f32 0.0, %v494
      %496 = vmatmul.bf16.gmra.mxu0 %v461
      %v497 = vpop.f32.mrf.mxu0
      %v498 = vadd.f32 0.0, %v497
      %v499 = vpop.f32.mrf.mxu0
      %v500 = vadd.f32 0.0, %v499
      %501 = vdwg.mxu0
      %v502 = vrot.slane %v473, 7
      %v503 = vrot.slane %v475, 7
      %v504 = vrot.slane %v478, 7
      %v505 = vrot.slane %v480, 7
      %v506 = vrot.slane %v483, 7
      %v507 = vrot.slane %v485, 7
      %v508 = vrot.slane %v488, 7
      %v509 = vrot.slane %v490, 7
      %v510 = vrot.slane %v493, 7
      %v511 = vrot.slane %v495, 7
      %v512 = vrot.slane %v498, 7
      %v513 = vrot.slane %v500, 7
      %vm514 = vcmp.lt.s32.totalorder %v338, 1
      %v515 = vsel %vm514, %v512, %v513
      %v516 = vsel %vm514, %v511, %v512
      %v517 = vsel %vm514, %v510, %v511
      %v518 = vsel %vm514, %v509, %v510
      %v519 = vsel %vm514, %v508, %v509
      %v520 = vsel %vm514, %v507, %v508
      %v521 = vsel %vm514, %v506, %v507
      %v522 = vsel %vm514, %v505, %v506
      %v523 = vsel %vm514, %v504, %v505
      %v524 = vsel %vm514, %v503, %v504
      %v525 = vsel %vm514, %v502, %v503
      %v526 = vsel %vm514, %v513, %v502
      %539 = vrot.lane.b32.xlu0 %v473, 64
      %v540 = vpop.permute.xlu0 %539
      %541 = vrot.lane.b32.xlu0 %v475, 64
      %v542 = vpop.permute.xlu0 %541
      %543 = vrot.lane.b32.xlu0 %v478, 64
      %v544 = vpop.permute.xlu0 %543
      %545 = vrot.lane.b32.xlu0 %v480, 64
      %v546 = vpop.permute.xlu0 %545
      %547 = vrot.lane.b32.xlu0 %v483, 64
      %v548 = vpop.permute.xlu0 %547
      %549 = vrot.lane.b32.xlu0 %v485, 64
      %v550 = vpop.permute.xlu0 %549
      %551 = vrot.lane.b32.xlu0 %v488, 64
      %v552 = vpop.permute.xlu0 %551
      %553 = vrot.lane.b32.xlu0 %v490, 64
      %v554 = vpop.permute.xlu0 %553
      %555 = vrot.lane.b32.xlu0 %v493, 64
      %v556 = vpop.permute.xlu0 %555
      %557 = vrot.lane.b32.xlu0 %v495, 64
      %v558 = vpop.permute.xlu0 %557
      %559 = vrot.lane.b32.xlu0 %v498, 64
      %v560 = vpop.permute.xlu0 %559
      %561 = vrot.lane.b32.xlu0 %v500, 64
      %v562 = vpop.permute.xlu0 %561
      %v575 = vrot.slane %v540, 1
      %v576 = vrot.slane %v542, 1
      %v577 = vrot.slane %v544, 1
      %v578 = vrot.slane %v546, 1
      %v579 = vrot.slane %v548, 1
      %v580 = vrot.slane %v550, 1
      %v581 = vrot.slane %v552, 1
      %v582 = vrot.slane %v554, 1
      %v583 = vrot.slane %v556, 1
      %v584 = vrot.slane %v558, 1
      %v585 = vrot.slane %v560, 1
      %v586 = vrot.slane %v562, 1
      %vm587 = vcmp.lt.s32.totalorder %v338, 7
      %v588 = vsel %vm587, %v585, %v586
      %v589 = vsel %vm587, %v584, %v585
      %v590 = vsel %vm587, %v583, %v584
      %v591 = vsel %vm587, %v582, %v583
      %v592 = vsel %vm587, %v581, %v582
      %v593 = vsel %vm587, %v580, %v581
      %v594 = vsel %vm587, %v579, %v580
      %v595 = vsel %vm587, %v578, %v579
      %v596 = vsel %vm587, %v577, %v578
      %v597 = vsel %vm587, %v576, %v577
      %v598 = vsel %vm587, %v575, %v576
      %v599 = vsel %vm587, %v586, %v575
      %600 = vrot.lane.b32.xlu0 %v473, 96
      %v601 = vpop.permute.xlu0 %600
      %602 = vrot.lane.b32.xlu0 %v475, 96
      %v603 = vpop.permute.xlu0 %602
      %604 = vrot.lane.b32.xlu0 %v478, 96
      %v605 = vpop.permute.xlu0 %604
      %606 = vrot.lane.b32.xlu0 %v480, 96
      %v607 = vpop.permute.xlu0 %606
      %608 = vrot.lane.b32.xlu0 %v483, 96
      %v609 = vpop.permute.xlu0 %608
      %610 = vrot.lane.b32.xlu0 %v485, 96
      %v611 = vpop.permute.xlu0 %610
      %612 = vrot.lane.b32.xlu0 %v488, 96
      %v613 = vpop.permute.xlu0 %612
      %614 = vrot.lane.b32.xlu0 %v490, 96
      %v615 = vpop.permute.xlu0 %614
      %616 = vrot.lane.b32.xlu0 %v493, 96
      %v617 = vpop.permute.xlu0 %616
      %618 = vrot.lane.b32.xlu0 %v495, 96
      %v619 = vpop.permute.xlu0 %618
      %620 = vrot.lane.b32.xlu0 %v498, 96
      %v621 = vpop.permute.xlu0 %620
      %622 = vrot.lane.b32.xlu0 %v500, 96
      %v623 = vpop.permute.xlu0 %622
      %v636 = vadd.f32 %v526, %v601
      %v637 = vadd.f32 %v525, %v603
      %v638 = vadd.f32 %v524, %v605
      %v639 = vadd.f32 %v523, %v607
      %v640 = vadd.f32 %v522, %v609
      %v641 = vadd.f32 %v521, %v611
      %v642 = vadd.f32 %v520, %v613
      %v643 = vadd.f32 %v519, %v615
      %v644 = vadd.f32 %v518, %v617
      %v645 = vadd.f32 %v517, %v619
      %v646 = vadd.f32 %v516, %v621
      %v647 = vadd.f32 %v515, %v623
      %v648 = vadd.f32 %v636, %v598
      %v649 = vadd.f32 %v637, %v597
      %v650 = vadd.f32 %v638, %v596
      %v651 = vadd.f32 %v639, %v595
      %v652 = vadd.f32 %v640, %v594
      %v653 = vadd.f32 %v641, %v593
      %v654 = vadd.f32 %v642, %v592
      %v655 = vadd.f32 %v643, %v591
      %v656 = vadd.f32 %v644, %v590
      %v657 = vadd.f32 %v645, %v589
      %v658 = vadd.f32 %v646, %v588
      %v659 = vadd.f32 %v647, %v599
      %v660 = vld [vmem:[%s2] sm:$0x1]
      %v662 = vperm.slane %v660, 0
      %v664 = vadd.f32 %v648, %v662
      %v665 = vadd.f32 %v649, %v662
      %v666 = vadd.f32 %v650, %v662
      %v667 = vadd.f32 %v651, %v662
      %v668 = vadd.f32 %v652, %v662
      %v669 = vadd.f32 %v653, %v662
      %v670 = vadd.f32 %v654, %v662
      %v671 = vadd.f32 %v655, %v662
      %v672 = vadd.f32 %v656, %v662
      %v673 = vadd.f32 %v657, %v662
      %v674 = vadd.f32 %v658, %v662
      %v675 = vadd.f32 %v659, %v662
      %v676 = vmax.f32 %v664, 0.0
      %v677 = vmax.f32 %v665, 0.0
      %v678 = vmax.f32 %v666, 0.0
      %v679 = vmax.f32 %v667, 0.0
      %v680 = vmax.f32 %v668, 0.0
      %v681 = vmax.f32 %v669, 0.0
      %v682 = vmax.f32 %v670, 0.0
      %v683 = vmax.f32 %v671, 0.0
      %v684 = vmax.f32 %v672, 0.0
      %v685 = vmax.f32 %v673, 0.0
      %v686 = vmax.f32 %v674, 0.0
      %v687 = vmax.f32 %v675, 0.0
      %v688 = vmul.f32 %v676, %v374
      %v689 = vmul.f32 %v677, %v375
      %v690 = vmul.f32 %v678, %v376
      %v691 = vmul.f32 %v679, %v377
      %v692 = vmul.f32 %v680, %v378
      %v693 = vmul.f32 %v681, %v379
      %v694 = vmul.f32 %v682, %v380
      %v695 = vmul.f32 %v683, %v381
      %v696 = vmul.f32 %v684, %v382
      %v697 = vmul.f32 %v685, %v383
      %v698 = vmul.f32 %v686, %v384
      %v699 = vmul.f32 %v687, %v385
      %v700 = vpack.c.bf16 %v689, %v688
      %v701 = vpack.c.bf16 %v691, %v690
      %v702 = vpack.c.bf16 %v693, %v692
      %v703 = vpack.c.bf16 %v695, %v694
      %v704 = vpack.c.bf16 %v697, %v696
      %v705 = vpack.c.bf16 %v699, %v698
      %v706 = vld [vmem:[%s3] sm:$0xff]
      %v707 = vld [vmem:[%s3 + $0x8] sm:$0xff]
      %v708 = vld [vmem:[%s3 + $0x10] sm:$0xff]
      %v709 = vld [vmem:[%s3 + $0x18] sm:$0xff]
      %v714 = vunpack.c.l.b16 %v706
      %v715 = vunpack.c.h.b16 %v706
      %v716 = vunpack.c.l.b16 %v707
      %v717 = vunpack.c.h.b16 %v707
      %v718 = vunpack.c.l.b16 %v708
      %v719 = vunpack.c.h.b16 %v708
      %v720 = vunpack.c.l.b16 %v709
      %v721 = vunpack.c.h.b16 %v709
      %v722 = vpack.c.b16 %v716, %v714
      %v723 = vpack.c.b16 %v717, %v715
      %v724 = vpack.c.b16 %v720, %v718
      %v725 = vpack.c.b16 %v721, %v719
      %v731 = vsel %vm444, %v700, 0
      %v734 = vsel %vm444, %v701, 0
      %v737 = vsel %vm444, %v702, 0
      %v740 = vsel %vm444, %v703, 0
      %v743 = vsel %vm444, %v704, 0
      %v746 = vsel %vm444, %v705, 0
      %748 = vmatpush.bf16.msra.mxu0 0
      %749 = vmatpush.bf16.msra.mxu0 0
      %750 = vmatpush.bf16.msra.mxu0 0
      %751 = vmatpush.bf16.msra.mxu0 0
      %752 = vmatpush.bf16.msra.mxu0 0
      %753 = vmatpush.bf16.msra.mxu0 0
      %754 = vmatpush.bf16.msra.mxu0 %v724
      %755 = vmatpush.bf16.msra.mxu0 %v722
      %756 = vmatmul.bf16.gmra.mxu0 %v731
      %v757 = vpop.f32.mrf.mxu0
      %v758 = vadd.f32 0.0, %v757
      %v759 = vpop.f32.mrf.mxu0
      %v760 = vadd.f32 0.0, %v759
      %761 = vmatmul.bf16.gmra.mxu0 %v734
      %v762 = vpop.f32.mrf.mxu0
      %v763 = vadd.f32 0.0, %v762
      %v764 = vpop.f32.mrf.mxu0
      %v765 = vadd.f32 0.0, %v764
      %766 = vmatmul.bf16.gmra.mxu0 %v737
      %v767 = vpop.f32.mrf.mxu0
      %v768 = vadd.f32 0.0, %v767
      %v769 = vpop.f32.mrf.mxu0
      %v770 = vadd.f32 0.0, %v769
      %771 = vmatmul.bf16.gmra.mxu0 %v740
      %v772 = vpop.f32.mrf.mxu0
      %v773 = vadd.f32 0.0, %v772
      %v774 = vpop.f32.mrf.mxu0
      %v775 = vadd.f32 0.0, %v774
      %776 = vmatmul.bf16.gmra.mxu0 %v743
      %v777 = vpop.f32.mrf.mxu0
      %v778 = vadd.f32 0.0, %v777
      %v779 = vpop.f32.mrf.mxu0
      %v780 = vadd.f32 0.0, %v779
      %781 = vmatmul.bf16.gmra.mxu0 %v746
      %v782 = vpop.f32.mrf.mxu0
      %v783 = vadd.f32 0.0, %v782
      %v784 = vpop.f32.mrf.mxu0
      %v785 = vadd.f32 0.0, %v784
      %786 = vdwg.mxu0
      %787 = vmatpush.bf16.msra.mxu0 0
      %788 = vmatpush.bf16.msra.mxu0 0
      %789 = vmatpush.bf16.msra.mxu0 0
      %790 = vmatpush.bf16.msra.mxu0 0
      %791 = vmatpush.bf16.msra.mxu0 0
      %792 = vmatpush.bf16.msra.mxu0 0
      %793 = vmatpush.bf16.msra.mxu0 %v725
      %794 = vmatpush.bf16.msra.mxu0 %v723
      %795 = vmatmul.bf16.gmra.mxu0 %v731
      %v796 = vpop.f32.mrf.mxu0
      %v797 = vadd.f32 0.0, %v796
      %v798 = vpop.f32.mrf.mxu0
      %v799 = vadd.f32 0.0, %v798
      %800 = vmatmul.bf16.gmra.mxu0 %v734
      %v801 = vpop.f32.mrf.mxu0
      %v802 = vadd.f32 0.0, %v801
      %v803 = vpop.f32.mrf.mxu0
      %v804 = vadd.f32 0.0, %v803
      %805 = vmatmul.bf16.gmra.mxu0 %v737
      %v806 = vpop.f32.mrf.mxu0
      %v807 = vadd.f32 0.0, %v806
      %v808 = vpop.f32.mrf.mxu0
      %v809 = vadd.f32 0.0, %v808
      %810 = vmatmul.bf16.gmra.mxu0 %v740
      %v811 = vpop.f32.mrf.mxu0
      %v812 = vadd.f32 0.0, %v811
      %v813 = vpop.f32.mrf.mxu0
      %v814 = vadd.f32 0.0, %v813
      %815 = vmatmul.bf16.gmra.mxu0 %v743
      %v816 = vpop.f32.mrf.mxu0
      %v817 = vadd.f32 0.0, %v816
      %v818 = vpop.f32.mrf.mxu0
      %v819 = vadd.f32 0.0, %v818
      %820 = vmatmul.bf16.gmra.mxu0 %v746
      %v821 = vpop.f32.mrf.mxu0
      %v822 = vadd.f32 0.0, %v821
      %v823 = vpop.f32.mrf.mxu0
      %v824 = vadd.f32 0.0, %v823
      %825 = vdwg.mxu0
      %v826 = vrot.slane %v758, 7
      %v827 = vrot.slane %v760, 7
      %v828 = vrot.slane %v763, 7
      %v829 = vrot.slane %v765, 7
      %v830 = vrot.slane %v768, 7
      %v831 = vrot.slane %v770, 7
      %v832 = vrot.slane %v773, 7
      %v833 = vrot.slane %v775, 7
      %v834 = vrot.slane %v778, 7
      %v835 = vrot.slane %v780, 7
      %v836 = vrot.slane %v783, 7
      %v837 = vrot.slane %v785, 7
      %v838 = vsel %vm514, %v836, %v837
      %v839 = vsel %vm514, %v835, %v836
      %v840 = vsel %vm514, %v834, %v835
      %v841 = vsel %vm514, %v833, %v834
      %v842 = vsel %vm514, %v832, %v833
      %v843 = vsel %vm514, %v831, %v832
      %v844 = vsel %vm514, %v830, %v831
      %v845 = vsel %vm514, %v829, %v830
      %v846 = vsel %vm514, %v828, %v829
      %v847 = vsel %vm514, %v827, %v828
      %v848 = vsel %vm514, %v826, %v827
      %v849 = vsel %vm514, %v837, %v826
      %v850 = vrot.slane %v797, 1
      %v851 = vrot.slane %v799, 1
      %v852 = vrot.slane %v802, 1
      %v853 = vrot.slane %v804, 1
      %v854 = vrot.slane %v807, 1
      %v855 = vrot.slane %v809, 1
      %v856 = vrot.slane %v812, 1
      %v857 = vrot.slane %v814, 1
      %v858 = vrot.slane %v817, 1
      %v859 = vrot.slane %v819, 1
      %v860 = vrot.slane %v822, 1
      %v861 = vrot.slane %v824, 1
      %v862 = vsel %vm587, %v860, %v861
      %v863 = vsel %vm587, %v859, %v860
      %v864 = vsel %vm587, %v858, %v859
      %v865 = vsel %vm587, %v857, %v858
      %v866 = vsel %vm587, %v856, %v857
      %v867 = vsel %vm587, %v855, %v856
      %v868 = vsel %vm587, %v854, %v855
      %v869 = vsel %vm587, %v853, %v854
      %v870 = vsel %vm587, %v852, %v853
      %v871 = vsel %vm587, %v851, %v852
      %v872 = vsel %vm587, %v850, %v851
      %v873 = vsel %vm587, %v861, %v850
      %886 = vrot.lane.b32.xlu0 %v758, 64
      %v887 = vpop.permute.xlu0 %886
      %888 = vrot.lane.b32.xlu0 %v760, 64
      %v889 = vpop.permute.xlu0 %888
      %890 = vrot.lane.b32.xlu0 %v763, 64
      %v891 = vpop.permute.xlu0 %890
      %892 = vrot.lane.b32.xlu0 %v765, 64
      %v893 = vpop.permute.xlu0 %892
      %894 = vrot.lane.b32.xlu0 %v768, 64
      %v895 = vpop.permute.xlu0 %894
      %896 = vrot.lane.b32.xlu0 %v770, 64
      %v897 = vpop.permute.xlu0 %896
      %898 = vrot.lane.b32.xlu0 %v773, 64
      %v899 = vpop.permute.xlu0 %898
      %900 = vrot.lane.b32.xlu0 %v775, 64
      %v901 = vpop.permute.xlu0 %900
      %902 = vrot.lane.b32.xlu0 %v778, 64
      %v903 = vpop.permute.xlu0 %902
      %904 = vrot.lane.b32.xlu0 %v780, 64
      %v905 = vpop.permute.xlu0 %904
      %906 = vrot.lane.b32.xlu0 %v783, 64
      %v907 = vpop.permute.xlu0 %906
      %908 = vrot.lane.b32.xlu0 %v785, 64
      %v909 = vpop.permute.xlu0 %908
      %v922 = vadd.f32 %v849, %v887
      %v923 = vadd.f32 %v848, %v889
      %v924 = vadd.f32 %v847, %v891
      %v925 = vadd.f32 %v846, %v893
      %v926 = vadd.f32 %v845, %v895
      %v927 = vadd.f32 %v844, %v897
      %v928 = vadd.f32 %v843, %v899
      %v929 = vadd.f32 %v842, %v901
      %v930 = vadd.f32 %v841, %v903
      %v931 = vadd.f32 %v840, %v905
      %v932 = vadd.f32 %v839, %v907
      %v933 = vadd.f32 %v838, %v909
      %v934 = vadd.f32 %v922, %v872
      %v935 = vadd.f32 %v923, %v871
      %v936 = vadd.f32 %v924, %v870
      %v937 = vadd.f32 %v925, %v869
      %v938 = vadd.f32 %v926, %v868
      %v939 = vadd.f32 %v927, %v867
      %v940 = vadd.f32 %v928, %v866
      %v941 = vadd.f32 %v929, %v865
      %v942 = vadd.f32 %v930, %v864
      %v943 = vadd.f32 %v931, %v863
      %v944 = vadd.f32 %v932, %v862
      %v945 = vadd.f32 %v933, %v873
      %v946 = vld [vmem:[%s4] sm:$0x1]
      %v948 = vperm.slane %v946, 0
      %v950 = vadd.f32 %v934, %v948
      %v951 = vadd.f32 %v935, %v948
      %v952 = vadd.f32 %v936, %v948
      %v953 = vadd.f32 %v937, %v948
      %v954 = vadd.f32 %v938, %v948
      %v955 = vadd.f32 %v939, %v948
      %v956 = vadd.f32 %v940, %v948
      %v957 = vadd.f32 %v941, %v948
      %v958 = vadd.f32 %v942, %v948
      %v959 = vadd.f32 %v943, %v948
      %v960 = vadd.f32 %v944, %v948
      %v961 = vadd.f32 %v945, %v948
      %v962 = vmax.f32 %v950, 0.0
      %v963 = vmax.f32 %v951, 0.0
      %v964 = vmax.f32 %v952, 0.0
      %v965 = vmax.f32 %v953, 0.0
      %v966 = vmax.f32 %v954, 0.0
      %v967 = vmax.f32 %v955, 0.0
      %v968 = vmax.f32 %v956, 0.0
      %v969 = vmax.f32 %v957, 0.0
      %v970 = vmax.f32 %v958, 0.0
      %v971 = vmax.f32 %v959, 0.0
      %v972 = vmax.f32 %v960, 0.0
      %v973 = vmax.f32 %v961, 0.0
      %v974 = vmul.f32 %v962, %v374
      %v975 = vmul.f32 %v963, %v375
      %v976 = vmul.f32 %v964, %v376
      %v977 = vmul.f32 %v965, %v377
      %v978 = vmul.f32 %v966, %v378
      %v979 = vmul.f32 %v967, %v379
      %v980 = vmul.f32 %v968, %v380
      %v981 = vmul.f32 %v969, %v381
      %v982 = vmul.f32 %v970, %v382
      %v983 = vmul.f32 %v971, %v383
      %v984 = vmul.f32 %v972, %v384
      %v985 = vmul.f32 %v973, %v385
      %v986 = vpack.c.bf16 %v975, %v974
      %v987 = vpack.c.bf16 %v977, %v976
      %v988 = vpack.c.bf16 %v979, %v978
      %v989 = vpack.c.bf16 %v981, %v980
      %v990 = vpack.c.bf16 %v983, %v982
      %v991 = vpack.c.bf16 %v985, %v984
      %v992 = vld [vmem:[%s5] sm:$0xff]
      %v993 = vld [vmem:[%s5 + $0x8] sm:$0xf]
      %v994 = vld [vmem:[%s5 + $0xc] sm:$0xff]
      %v995 = vld [vmem:[%s5 + $0x14] sm:$0xf]
      %v996 = vld [vmem:[%s5 + $0x18] sm:$0xff]
      %v997 = vld [vmem:[%s5 + $0x20] sm:$0xf]
      %v998 = vld [vmem:[%s5 + $0x24] sm:$0xff]
      %v999 = vld [vmem:[%s5 + $0x2c] sm:$0xf]
      %v1000 = vld [vmem:[%s5 + $0x30] sm:$0xff]
      %v1001 = vld [vmem:[%s5 + $0x38] sm:$0xf]
      %v1002 = vld [vmem:[%s5 + $0x3c] sm:$0xff]
      %v1003 = vld [vmem:[%s5 + $0x44] sm:$0xf]
      %v1004 = vld [vmem:[%s5 + $0x48] sm:$0xff]
      %v1005 = vld [vmem:[%s5 + $0x50] sm:$0xf]
      %v1006 = vld [vmem:[%s5 + $0x54] sm:$0xff]
      %v1007 = vld [vmem:[%s5 + $0x5c] sm:$0xf]
      %v1024 = vunpack.c.l.b16 %v992
      %v1025 = vunpack.c.h.b16 %v992
      %v1026 = vunpack.c.l.b16 %v993
      %v1027 = vunpack.c.l.b16 %v994
      %v1028 = vunpack.c.h.b16 %v994
      %v1029 = vunpack.c.l.b16 %v995
      %v1030 = vunpack.c.l.b16 %v996
      %v1031 = vunpack.c.h.b16 %v996
      %v1032 = vunpack.c.l.b16 %v997
      %v1033 = vunpack.c.l.b16 %v998
      %v1034 = vunpack.c.h.b16 %v998
      %v1035 = vunpack.c.l.b16 %v999
      %v1036 = vunpack.c.l.b16 %v1000
      %v1037 = vunpack.c.h.b16 %v1000
      %v1038 = vunpack.c.l.b16 %v1001
      %v1039 = vunpack.c.l.b16 %v1002
      %v1040 = vunpack.c.h.b16 %v1002
      %v1041 = vunpack.c.l.b16 %v1003
      %v1042 = vunpack.c.l.b16 %v1004
      %v1043 = vunpack.c.h.b16 %v1004
      %v1044 = vunpack.c.l.b16 %v1005
      %v1045 = vunpack.c.l.b16 %v1006
      %v1046 = vunpack.c.h.b16 %v1006
      %v1047 = vunpack.c.l.b16 %v1007
      %v1048 = vpack.c.b16 %v1027, %v1024
      %v1049 = vpack.c.b16 %v1028, %v1025
      %v1050 = vpack.c.b16 %v1029, %v1026
      %v1051 = vpack.c.b16 %v1033, %v1030
      %v1052 = vpack.c.b16 %v1034, %v1031
      %v1053 = vpack.c.b16 %v1035, %v1032
      %v1054 = vpack.c.b16 %v1039, %v1036
      %v1055 = vpack.c.b16 %v1040, %v1037
      %v1056 = vpack.c.b16 %v1041, %v1038
      %v1057 = vpack.c.b16 %v1045, %v1042
      %v1058 = vpack.c.b16 %v1046, %v1043
      %v1059 = vpack.c.b16 %v1047, %v1044
      %vm1072 = vcmask 523264
      %v1074 = vsel %vm1072, %v986, 0
      %v1077 = vsel %vm1072, %v987, 0
      %v1080 = vsel %vm1072, %v988, 0
      %v1083 = vsel %vm1072, %v989, 0
      %v1086 = vsel %vm1072, %v990, 0
      %v1089 = vsel %vm1072, %v991, 0
      %1091 = vmatpush.bf16.msra.mxu0 0
      %1092 = vmatpush.bf16.msra.mxu0 0
      %1093 = vmatpush.bf16.msra.mxu0 0
      %1094 = vmatpush.bf16.msra.mxu0 0
      %1095 = vmatpush.bf16.msra.mxu0 %v1057
      %1096 = vmatpush.bf16.msra.mxu0 %v1054
      %1097 = vmatpush.bf16.msra.mxu0 %v1051
      %1098 = vmatpush.bf16.msra.mxu0 %v1048
      %1099 = vmatmul.bf16.gmra.mxu0 %v1074
      %v1100 = vpop.f32.mrf.mxu0
      %v1101 = vadd.f32 0.0, %v1100
      %v1102 = vpop.f32.mrf.mxu0
      %v1103 = vadd.f32 0.0, %v1102
      %1104 = vmatmul.bf16.gmra.mxu0 %v1077
      %v1105 = vpop.f32.mrf.mxu0
      %v1106 = vadd.f32 0.0, %v1105
      %v1107 = vpop.f32.mrf.mxu0
      %v1108 = vadd.f32 0.0, %v1107
      %1109 = vmatmul.bf16.gmra.mxu0 %v1080
      %v1110 = vpop.f32.mrf.mxu0
      %v1111 = vadd.f32 0.0, %v1110
      %v1112 = vpop.f32.mrf.mxu0
      %v1113 = vadd.f32 0.0, %v1112
      %1114 = vmatmul.bf16.gmra.mxu0 %v1083
      %v1115 = vpop.f32.mrf.mxu0
      %v1116 = vadd.f32 0.0, %v1115
      %v1117 = vpop.f32.mrf.mxu0
      %v1118 = vadd.f32 0.0, %v1117
      %1119 = vmatmul.bf16.gmra.mxu0 %v1086
      %v1120 = vpop.f32.mrf.mxu0
      %v1121 = vadd.f32 0.0, %v1120
      %v1122 = vpop.f32.mrf.mxu0
      %v1123 = vadd.f32 0.0, %v1122
      %1124 = vmatmul.bf16.gmra.mxu0 %v1089
      %v1125 = vpop.f32.mrf.mxu0
      %v1126 = vadd.f32 0.0, %v1125
      %v1127 = vpop.f32.mrf.mxu0
      %v1128 = vadd.f32 0.0, %v1127
      %1129 = vdwg.mxu0
      %1130 = vmatpush.bf16.msra.mxu0 0
      %1131 = vmatpush.bf16.msra.mxu0 0
      %1132 = vmatpush.bf16.msra.mxu0 0
      %1133 = vmatpush.bf16.msra.mxu0 0
      %1134 = vmatpush.bf16.msra.mxu0 %v1058
      %1135 = vmatpush.bf16.msra.mxu0 %v1055
      %1136 = vmatpush.bf16.msra.mxu0 %v1052
      %1137 = vmatpush.bf16.msra.mxu0 %v1049
      %1138 = vmatmul.bf16.gmra.mxu0 %v1074
      %v1139 = vpop.f32.mrf.mxu0
      %v1140 = vadd.f32 0.0, %v1139
      %v1141 = vpop.f32.mrf.mxu0
      %v1142 = vadd.f32 0.0, %v1141
      %1143 = vmatmul.bf16.gmra.mxu0 %v1077
      %v1144 = vpop.f32.mrf.mxu0
      %v1145 = vadd.f32 0.0, %v1144
      %v1146 = vpop.f32.mrf.mxu0
      %v1147 = vadd.f32 0.0, %v1146
      %1148 = vmatmul.bf16.gmra.mxu0 %v1080
      %v1149 = vpop.f32.mrf.mxu0
      %v1150 = vadd.f32 0.0, %v1149
      %v1151 = vpop.f32.mrf.mxu0
      %v1152 = vadd.f32 0.0, %v1151
      %1153 = vmatmul.bf16.gmra.mxu0 %v1083
      %v1154 = vpop.f32.mrf.mxu0
      %v1155 = vadd.f32 0.0, %v1154
      %v1156 = vpop.f32.mrf.mxu0
      %v1157 = vadd.f32 0.0, %v1156
      %1158 = vmatmul.bf16.gmra.mxu0 %v1086
      %v1159 = vpop.f32.mrf.mxu0
      %v1160 = vadd.f32 0.0, %v1159
      %v1161 = vpop.f32.mrf.mxu0
      %v1162 = vadd.f32 0.0, %v1161
      %1163 = vmatmul.bf16.gmra.mxu0 %v1089
      %v1164 = vpop.f32.mrf.mxu0
      %v1165 = vadd.f32 0.0, %v1164
      %v1166 = vpop.f32.mrf.mxu0
      %v1167 = vadd.f32 0.0, %v1166
      %1168 = vdwg.mxu0
      %1169 = vmatpush.bf16.msra.mxu0 0
      %1170 = vmatpush.bf16.msra.mxu0 0
      %1171 = vmatpush.bf16.msra.mxu0 0
      %1172 = vmatpush.bf16.msra.mxu0 0
      %1173 = vmatpush.bf16.msra.mxu0 %v1059
      %1174 = vmatpush.bf16.msra.mxu0 %v1056
      %1175 = vmatpush.bf16.msra.mxu0 %v1053
      %1176 = vmatpush.bf16.msra.mxu0 %v1050
      %1177 = vmatmul.bf16.gmra.mxu0 %v1074
      %v1178 = vpop.f32.mrf.mxu0
      %v1179 = vadd.f32 0.0, %v1178
      %v1180 = vpop.f32.mrf.mxu0
      %v1181 = vadd.f32 0.0, %v1180
      %1182 = vmatmul.bf16.gmra.mxu0 %v1077
      %v1183 = vpop.f32.mrf.mxu0
      %v1184 = vadd.f32 0.0, %v1183
      %v1185 = vpop.f32.mrf.mxu0
      %v1186 = vadd.f32 0.0, %v1185
      %1187 = vmatmul.bf16.gmra.mxu0 %v1080
      %v1188 = vpop.f32.mrf.mxu0
      %v1189 = vadd.f32 0.0, %v1188
      %v1190 = vpop.f32.mrf.mxu0
      %v1191 = vadd.f32 0.0, %v1190
      %1192 = vmatmul.bf16.gmra.mxu0 %v1083
      %v1193 = vpop.f32.mrf.mxu0
      %v1194 = vadd.f32 0.0, %v1193
      %v1195 = vpop.f32.mrf.mxu0
      %v1196 = vadd.f32 0.0, %v1195
      %1197 = vmatmul.bf16.gmra.mxu0 %v1086
      %v1198 = vpop.f32.mrf.mxu0
      %v1199 = vadd.f32 0.0, %v1198
      %v1200 = vpop.f32.mrf.mxu0
      %v1201 = vadd.f32 0.0, %v1200
      %1202 = vmatmul.bf16.gmra.mxu0 %v1089
      %v1203 = vpop.f32.mrf.mxu0
      %v1204 = vadd.f32 0.0, %v1203
      %v1205 = vpop.f32.mrf.mxu0
      %v1206 = vadd.f32 0.0, %v1205
      %1207 = vdwg.mxu0
      %v1208 = vrot.slane %v1101, 7
      %v1209 = vrot.slane %v1103, 7
      %v1210 = vrot.slane %v1106, 7
      %v1211 = vrot.slane %v1108, 7
      %v1212 = vrot.slane %v1111, 7
      %v1213 = vrot.slane %v1113, 7
      %v1214 = vrot.slane %v1116, 7
      %v1215 = vrot.slane %v1118, 7
      %v1216 = vrot.slane %v1121, 7
      %v1217 = vrot.slane %v1123, 7
      %v1218 = vrot.slane %v1126, 7
      %v1219 = vrot.slane %v1128, 7
      %v1220 = vsel %vm514, %v1218, %v1219
      %v1221 = vsel %vm514, %v1217, %v1218
      %v1222 = vsel %vm514, %v1216, %v1217
      %v1223 = vsel %vm514, %v1215, %v1216
      %v1224 = vsel %vm514, %v1214, %v1215
      %v1225 = vsel %vm514, %v1213, %v1214
      %v1226 = vsel %vm514, %v1212, %v1213
      %v1227 = vsel %vm514, %v1211, %v1212
      %v1228 = vsel %vm514, %v1210, %v1211
      %v1229 = vsel %vm514, %v1209, %v1210
      %v1230 = vsel %vm514, %v1208, %v1209
      %v1231 = vsel %vm514, %v1219, %v1208
      %v1232 = vrot.slane %v1179, 1
      %v1233 = vrot.slane %v1181, 1
      %v1234 = vrot.slane %v1184, 1
      %v1235 = vrot.slane %v1186, 1
      %v1236 = vrot.slane %v1189, 1
      %v1237 = vrot.slane %v1191, 1
      %v1238 = vrot.slane %v1194, 1
      %v1239 = vrot.slane %v1196, 1
      %v1240 = vrot.slane %v1199, 1
      %v1241 = vrot.slane %v1201, 1
      %v1242 = vrot.slane %v1204, 1
      %v1243 = vrot.slane %v1206, 1
      %v1244 = vsel %vm587, %v1242, %v1243
      %v1245 = vsel %vm587, %v1241, %v1242
      %v1246 = vsel %vm587, %v1240, %v1241
      %v1247 = vsel %vm587, %v1239, %v1240
      %v1248 = vsel %vm587, %v1238, %v1239
      %v1249 = vsel %vm587, %v1237, %v1238
      %v1250 = vsel %vm587, %v1236, %v1237
      %v1251 = vsel %vm587, %v1235, %v1236
      %v1252 = vsel %vm587, %v1234, %v1235
      %v1253 = vsel %vm587, %v1233, %v1234
      %v1254 = vsel %vm587, %v1232, %v1233
      %v1255 = vsel %vm587, %v1243, %v1232
      %v1256 = vadd.f32 %v1231, %v1140
      %v1257 = vadd.f32 %v1230, %v1142
      %v1258 = vadd.f32 %v1229, %v1145
      %v1259 = vadd.f32 %v1228, %v1147
      %v1260 = vadd.f32 %v1227, %v1150
      %v1261 = vadd.f32 %v1226, %v1152
      %v1262 = vadd.f32 %v1225, %v1155
      %v1263 = vadd.f32 %v1224, %v1157
      %v1264 = vadd.f32 %v1223, %v1160
      %v1265 = vadd.f32 %v1222, %v1162
      %v1266 = vadd.f32 %v1221, %v1165
      %v1267 = vadd.f32 %v1220, %v1167
      %v1268 = vadd.f32 %v1256, %v1254
      %v1269 = vadd.f32 %v1257, %v1253
      %v1270 = vadd.f32 %v1258, %v1252
      %v1271 = vadd.f32 %v1259, %v1251
      %v1272 = vadd.f32 %v1260, %v1250
      %v1273 = vadd.f32 %v1261, %v1249
      %v1274 = vadd.f32 %v1262, %v1248
      %v1275 = vadd.f32 %v1263, %v1247
      %v1276 = vadd.f32 %v1264, %v1246
      %v1277 = vadd.f32 %v1265, %v1245
      %v1278 = vadd.f32 %v1266, %v1244
      %v1279 = vadd.f32 %v1267, %v1255
      %v1280 = vld [vmem:[%s6] sm:$0x1]
      %v1282 = vperm.slane %v1280, 0
      %v1284 = vadd.f32 %v1268, %v1282
      %v1285 = vadd.f32 %v1269, %v1282
      %v1286 = vadd.f32 %v1270, %v1282
      %v1287 = vadd.f32 %v1271, %v1282
      %v1288 = vadd.f32 %v1272, %v1282
      %v1289 = vadd.f32 %v1273, %v1282
      %v1290 = vadd.f32 %v1274, %v1282
      %v1291 = vadd.f32 %v1275, %v1282
      %v1292 = vadd.f32 %v1276, %v1282
      %v1293 = vadd.f32 %v1277, %v1282
      %v1294 = vadd.f32 %v1278, %v1282
      %v1295 = vadd.f32 %v1279, %v1282
      %v1296 = vmax.f32 %v1284, 0.0
      %v1297 = vmax.f32 %v1285, 0.0
      %v1298 = vmax.f32 %v1286, 0.0
      %v1299 = vmax.f32 %v1287, 0.0
      %v1300 = vmax.f32 %v1288, 0.0
      %v1301 = vmax.f32 %v1289, 0.0
      %v1302 = vmax.f32 %v1290, 0.0
      %v1303 = vmax.f32 %v1291, 0.0
      %v1304 = vmax.f32 %v1292, 0.0
      %v1305 = vmax.f32 %v1293, 0.0
      %v1306 = vmax.f32 %v1294, 0.0
      %v1307 = vmax.f32 %v1295, 0.0
      %v1308 = vmul.f32 %v1296, %v374
      %v1309 = vmul.f32 %v1297, %v375
      %v1310 = vmul.f32 %v1298, %v376
      %v1311 = vmul.f32 %v1299, %v377
      %v1312 = vmul.f32 %v1300, %v378
      %v1313 = vmul.f32 %v1301, %v379
      %v1314 = vmul.f32 %v1302, %v380
      %v1315 = vmul.f32 %v1303, %v381
      %v1316 = vmul.f32 %v1304, %v382
      %v1317 = vmul.f32 %v1305, %v383
      %v1318 = vmul.f32 %v1306, %v384
      %v1319 = vmul.f32 %v1307, %v385
      %v1320 = vpack.c.bf16 %v1309, %v1308
      %v1321 = vpack.c.bf16 %v1311, %v1310
      %v1322 = vpack.c.bf16 %v1313, %v1312
      %v1323 = vpack.c.bf16 %v1315, %v1314
      %v1324 = vpack.c.bf16 %v1317, %v1316
      %v1325 = vpack.c.bf16 %v1319, %v1318
      %v1326 = vld [vmem:[%s7] sm:$0xf]
      %v1327 = vld [vmem:[%s7 + $0x4] sm:$0xf]
      %v1328 = vld [vmem:[%s7 + $0x8] sm:$0xf]
      %v1329 = vld [vmem:[%s7 + $0xc] sm:$0xf]
      %v1330 = vld [vmem:[%s7 + $0x10] sm:$0xf]
      %v1331 = vld [vmem:[%s7 + $0x14] sm:$0xf]
      %v1332 = vld [vmem:[%s7 + $0x18] sm:$0xf]
      %v1333 = vld [vmem:[%s7 + $0x1c] sm:$0xf]
      %v1334 = vld [vmem:[%s7 + $0x20] sm:$0xf]
      %v1335 = vld [vmem:[%s7 + $0x24] sm:$0xf]
      %v1336 = vld [vmem:[%s7 + $0x28] sm:$0xf]
      %v1337 = vld [vmem:[%s7 + $0x2c] sm:$0xf]
      %v1338 = vld [vmem:[%s7 + $0x30] sm:$0xf]
      %v1339 = vld [vmem:[%s7 + $0x34] sm:$0xf]
      %v1340 = vld [vmem:[%s7 + $0x38] sm:$0xf]
      %v1341 = vld [vmem:[%s7 + $0x3c] sm:$0xf]
      %v1342 = vld [vmem:[%s8] sm:$0x1]
      %v1344 = vperm.slane %v1342, 0
      %v1362 = vunpack.c.l.b16 %v1326
      %v1363 = vunpack.c.l.b16 %v1327
      %v1364 = vunpack.c.l.b16 %v1328
      %v1365 = vunpack.c.l.b16 %v1329
      %v1366 = vunpack.c.l.b16 %v1330
      %v1367 = vunpack.c.l.b16 %v1331
      %v1368 = vunpack.c.l.b16 %v1332
      %v1369 = vunpack.c.l.b16 %v1333
      %v1370 = vunpack.c.l.b16 %v1334
      %v1371 = vunpack.c.l.b16 %v1335
      %v1372 = vunpack.c.l.b16 %v1336
      %v1373 = vunpack.c.l.b16 %v1337
      %v1374 = vunpack.c.l.b16 %v1338
      %v1375 = vunpack.c.l.b16 %v1339
      %v1376 = vunpack.c.l.b16 %v1340
      %v1377 = vunpack.c.l.b16 %v1341
      %v1378 = vpack.c.b16 %v1363, %v1362
      %v1379 = vpack.c.b16 %v1365, %v1364
      %v1380 = vpack.c.b16 %v1367, %v1366
      %v1381 = vpack.c.b16 %v1369, %v1368
      %v1382 = vpack.c.b16 %v1371, %v1370
      %v1383 = vpack.c.b16 %v1373, %v1372
      %v1384 = vpack.c.b16 %v1375, %v1374
      %v1385 = vpack.c.b16 %v1377, %v1376
      %1394 = vmatpush.bf16.msra.mxu0 %v1385
      %1395 = vmatpush.bf16.msra.mxu0 %v1384
      %1396 = vmatpush.bf16.msra.mxu0 %v1383
      %1397 = vmatpush.bf16.msra.mxu0 %v1382
      %1398 = vmatpush.bf16.msra.mxu0 %v1381
      %1399 = vmatpush.bf16.msra.mxu0 %v1380
      %1400 = vmatpush.bf16.msra.mxu0 %v1379
      %1401 = vmatpush.bf16.msra.mxu0 %v1378
      %1402 = vmatmul.bf16.gmra.mxu0 %v1320
      %v1403 = vpop.f32.mrf.mxu0
      %v1404 = vadd.f32 %v1344, %v1403
      %v1405 = vpop.f32.mrf.mxu0
      %v1406 = vadd.f32 %v1344, %v1405
      %1407 = vmatmul.bf16.gmra.mxu0 %v1321
      %v1408 = vpop.f32.mrf.mxu0
      %v1409 = vadd.f32 %v1344, %v1408
      %v1410 = vpop.f32.mrf.mxu0
      %v1411 = vadd.f32 %v1344, %v1410
      %1412 = vmatmul.bf16.gmra.mxu0 %v1322
      %v1413 = vpop.f32.mrf.mxu0
      %v1414 = vadd.f32 %v1344, %v1413
      %v1415 = vpop.f32.mrf.mxu0
      %v1416 = vadd.f32 %v1344, %v1415
      %1417 = vmatmul.bf16.gmra.mxu0 %v1323
      %v1418 = vpop.f32.mrf.mxu0
      %v1419 = vadd.f32 %v1344, %v1418
      %v1420 = vpop.f32.mrf.mxu0
      %v1421 = vadd.f32 %v1344, %v1420
      %1422 = vmatmul.bf16.gmra.mxu0 %v1324
      %v1423 = vpop.f32.mrf.mxu0
      %v1424 = vadd.f32 %v1344, %v1423
      %v1425 = vpop.f32.mrf.mxu0
      %v1426 = vadd.f32 %v1344, %v1425
      %1427 = vmatmul.bf16.gmra.mxu0 %v1325
      %v1428 = vpop.f32.mrf.mxu0
      %v1429 = vadd.f32 %v1344, %v1428
      %v1430 = vpop.f32.mrf.mxu0
      %v1431 = vadd.f32 %v1344, %v1430
      %1432 = vdwg.mxu0
      %1433 = vst [vmem:[%s334] sm:$0xff] %v1404
      %1434 = vst [vmem:[%s334 + $0x8] sm:$0xff] %v1406
      %1435 = vst [vmem:[%s334 + $0x10] sm:$0xff] %v1409
      %1436 = vst [vmem:[%s334 + $0x18] sm:$0xff] %v1411
      %1437 = vst [vmem:[%s334 + $0x20] sm:$0xff] %v1414
      %1438 = vst [vmem:[%s334 + $0x28] sm:$0xff] %v1416
      %1439 = vst [vmem:[%s334 + $0x30] sm:$0xff] %v1419
      %1440 = vst [vmem:[%s334 + $0x38] sm:$0xff] %v1421
      %1441 = vst [vmem:[%s334 + $0x40] sm:$0xff] %v1424
      %1442 = vst [vmem:[%s334 + $0x48] sm:$0xff] %v1426
      %1443 = vst [vmem:[%s334 + $0x50] sm:$0xff] %v1429
      %1444 = vst [vmem:[%s334 + $0x58] sm:$0xff] %v1431
      %s1445 = smul.u32 12, %s20
      %p1446 = scmp.lt.s32.totalorder %s1445, 23
      %s1447 = scalar_select %p1446, %s1445, 23
      %s1448 = smul.addr %s1447, 8
      %s1449 = scalar_lea.vmem %s9, %s1448
      // Predicated region
      $region57: #{simple_conv1d_forward.1} parent=55 // pred_check
        %p1450 = pneg %p232
      $region58: #{simple_conv1d_forward.1} parent=55 // pred_check_branch
        %1452 = sbr.rel (%p1450) target = $region60
      $region59: #{simple_conv1d_forward.1} parent=55 // pred_region
        %s1453 = smul.u32 12, %s20
      $region60: #{simple_conv1d_forward.1} parent=55 // pred_fallthru
        _
    $region56: #{simple_conv1d_forward.1} parent=5 // pred_fallthru
      _
    %p1454 = scmp.le.s32.totalorder 2, %s15
    // Predicated region
    $region61: #{simple_conv1d_forward.1} parent=5 // pred_check
      %p1455 = pneg %p1454
    $region62: #{simple_conv1d_forward.1} parent=5 // pred_check_branch
      %1457 = sbr.rel (%p1455) target = $region64
    $region63: #{simple_conv1d_forward.1} parent=5 // pred_region
      %s1458 = ssub.s32 %s15, 2
      // Predicated region
      $region65: #{simple_conv1d_forward.1} parent=63 // pred_check
        %p1459 = pneg %p238
      $region66: #{simple_conv1d_forward.1} parent=63 // pred_check_branch
        %1461 = sbr.rel (%p1459) target = $region68
      $region67: #{simple_conv1d_forward.1} parent=63 // pred_region
        %s1462 = smul.u32 12, %s21
        %p1463 = scmp.lt.s32.totalorder %s1462, 23
        %s1464 = scalar_select %p1463, %s1462, 23
        %s1465 = smul.addr %s1464, 8
        %s1466 = scalar_lea.vmem %s9, %s1465
      $region68: #{simple_conv1d_forward.1} parent=63 // pred_fallthru
        _
    $region64: #{simple_conv1d_forward.1} parent=5 // pred_fallthru
      _
  $region6: #{simple_conv1d_forward.1} parent=0 // loop_footer
    %s19 = sadd.s32 1, %s15
  $region7: #{simple_conv1d_forward.1} parent=0 // loop_footer_branch
    %14 = sbr.rel target = $region3
  $region8: #{simple_conv1d_forward.1} parent=0 // loop_exit
    _

</llo_original>
